<compile_context>
chip_gen: v6e
topology: v6e:2x2x1
jax: 0.10.0
libtpu: 0.0.40
codegen_flags: <defaults>
</compile_context>

<pallas_src>
import numpy as np
import jax
import jax.numpy as jnp
from jax.experimental import pallas as pl
from jax.experimental.pallas import tpu as pltpu


# ----------------------------------------------------------------------------
# Fused kernel factory
# ----------------------------------------------------------------------------

def make_fused_mstcn_kernel(num_stages, num_layers, dilations, C, N, T):
    """dilations: tuple (per stage) of tuples (per layer) of python ints."""
    NT = N * T
    uniq_d = sorted({d for ds in dilations for d in ds})

    def kernel(x_ref, tpos_ref, *rest):
        # rest = 8 weight refs per stage, then out_ref.
        *wrefs, out_ref = rest

        tpos = tpos_ref[...]                      # (1, NT) int32: time index within each sample

        # Boundary masks hoisted out of the unrolled stage/layer loops:
        # one compare pair per UNIQUE dilation, reused everywhere.
        lmask = {d: tpos >= d for d in uniq_d}        # keep tap x[t - d]
        rmask = {d: tpos < (T - d) for d in uniq_d}   # keep tap x[t + d]

        cur = x_ref[...]                          # (Cin, NT) f32 (BN folded into stage-1 conv)

        for s in range(num_stages):
            w_in, b_in, w3c, b3, w1, b1, w_out, b_out = wrefs[8 * s: 8 * (s + 1)]

            # input 1x1 conv (bf16 operands, f32 accumulation on the MXU)
            h = jnp.dot(w_in[...], cur.astype(jnp.bfloat16),
                        preferred_element_type=jnp.float32) + b_in[...]

            for l in range(num_layers):
                d = dilations[s][l]
                # x_left[t] = h[t - d], x_right[t] = h[t + d] via XLU lane
                # rotation; wrap-around / cross-sample taps are zeroed by the
                # masks (== the conv's zero padding).
                x_left = jnp.where(lmask[d], pltpu.roll(h, d, axis=1), 0.0)
                x_right = jnp.where(rmask[d], pltpu.roll(h, NT - d, axis=1), 0.0)

                # 3-tap dilated conv as ONE K=3C MXU matmul.
                xcat = jnp.concatenate([x_left, h, x_right], axis=0)   # (3C, NT) f32
                z = jnp.dot(w3c[l], xcat.astype(jnp.bfloat16),
                            preferred_element_type=jnp.float32) + b3[l]
                z = jnp.maximum(z, 0.0)                                # ReLU (VPU, f32)

                # 1x1 conv + residual add.  Dropout is identity in eval mode.
                h = h + jnp.dot(w1[l], z.astype(jnp.bfloat16),
                                preferred_element_type=jnp.float32) + b1[l]

            cur = jnp.dot(w_out[...], h.astype(jnp.bfloat16),
                          preferred_element_type=jnp.float32) + b_out[...]
            out_ref[s] = cur                      # (num_classes, NT) f32

    return kernel


# ----------------------------------------------------------------------------
# Forward pass wrapper (one pallas_call for the whole network)
# ----------------------------------------------------------------------------

def mstcn_forward(params, x):
    N, dim, T = x.shape
    stages = [params["stage1"]] + list(params["stages"])
    num_stages = len(stages)
    num_layers = len(stages[0]["layers"])
    dilations = tuple(tuple(int(lp["dilation"]) for lp in p["layers"]) for p in stages)
    C = stages[0]["w_in"].shape[0]
    num_classes = stages[0]["w_out"].shape[0]
    NT = N * T

    # ---- host-side weight prep (cheap, outside the kernel) ----
    scale = params["bn_scale"][:, 0]               # (dim,)
    shift = params["bn_shift"]                     # (dim, 1)
    flat_weights = []
    for s_idx, p in enumerate(stages):
        w_in, b_in = p["w_in"], p["b_in"]
        if s_idx == 0:
            # fold eval-mode BatchNorm into stage-1's input conv (in f32, then cast)
            w_in = w_in * scale[None, :]
            b_in = b_in + p["w_in"] @ shift
        # taps (3, C, C) -> (L, C, 3C): columns ordered [tap0 | tap1 | tap2]
        # matching the kernel's [x[t-d] | x[t] | x[t+d]] concatenation.
        w3c = jnp.stack([jnp.transpose(lp["w3"], (1, 0, 2)).reshape(C, 3 * C)
                         for lp in p["layers"]])
        b3 = jnp.stack([lp["b3"] for lp in p["layers"]])
        w1 = jnp.stack([lp["w1"] for lp in p["layers"]])
        b1 = jnp.stack([lp["b1"] for lp in p["layers"]])
        # Matmul weights in bf16 (MXU-native on v5e/v6e/v7x); biases stay f32.
        flat_weights += [w_in.astype(jnp.bfloat16), b_in,
                         w3c.astype(jnp.bfloat16), b3,
                         w1.astype(jnp.bfloat16), b1,
                         p["w_out"].astype(jnp.bfloat16), p["b_out"]]

    # fold batch into the lane axis: (N, Cin, T) -> (Cin, N*T)  (lane-dense)
    x2d = jnp.transpose(x, (1, 0, 2)).reshape(dim, NT)
    # time index within each sample, along lanes
    tpos = jnp.tile(jnp.arange(T, dtype=jnp.int32), (N,)).reshape(1, NT)

    kernel = make_fused_mstcn_kernel(num_stages, num_layers, dilations, C, N, T)

    # No grid / no BlockSpecs: every operand and the output are whole-array
    # VMEM-resident blocks (all weights + activations total well under 1 MiB).
    out2d = pl.pallas_call(
        kernel,
        out_shape=jax.ShapeDtypeStruct((num_stages, num_classes, NT), jnp.float32),
    )(x2d, tpos, *flat_weights)

    # (S, num_classes, N*T) -> (S, N, num_classes, T)
    return out2d.reshape(num_stages, num_classes, N, T).transpose(0, 2, 1, 3)


# ----------------------------------------------------------------------------
# Parameter init (deterministic, synthetic)
# ----------------------------------------------------------------------------

def _rand(key, shape, scale=0.1):
    return scale * jax.random.normal(key, shape, dtype=jnp.float32)


def init_single_stage(key, num_layers, num_f_maps, in_dim, num_classes):
    keys = jax.random.split(key, 4 + 4 * num_layers)
    p = {}
    p["w_in"] = _rand(keys[0], (num_f_maps, in_dim))
    p["b_in"] = _rand(keys[1], (num_f_maps, 1))
    p["layers"] = []
    for i in range(num_layers):
        k0, k1, k2, k3 = keys[4 + 4 * i: 8 + 4 * i]
        p["layers"].append({
            # stored as (3, Cout, Cin): tap k of PyTorch (Cout, Cin, 3) weight
            "w3": _rand(k0, (3, num_f_maps, num_f_maps)),
            "b3": _rand(k1, (num_f_maps, 1)),
            "w1": _rand(k2, (num_f_maps, num_f_maps)),
            "b1": _rand(k3, (num_f_maps, 1)),
            "dilation": 2 ** i,
        })
    p["w_out"] = _rand(keys[2], (num_classes, num_f_maps))
    p["b_out"] = _rand(keys[3], (num_classes, 1))
    return p


def init_mstcn(key, num_stages, num_layers, num_f_maps, dim, num_classes):
    keys = jax.random.split(key, num_stages + 1)
    params = {}
    # BatchNorm1d(12), eval mode: fold into per-channel scale/shift
    kb = jax.random.split(keys[0], 4)
    gamma = 1.0 + _rand(kb[0], (dim, 1))
    beta = _rand(kb[1], (dim, 1))
    running_mean = _rand(kb[2], (dim, 1))
    running_var = 1.0 + 0.1 * jax.nn.sigmoid(_rand(kb[3], (dim, 1)))
    eps = 1e-5
    params["bn_scale"] = gamma / jnp.sqrt(running_var + eps)
    params["bn_shift"] = beta - running_mean * params["bn_scale"]
    params["stage1"] = init_single_stage(keys[1], num_layers, num_f_maps, dim, num_classes)
    params["stages"] = [
        init_single_stage(keys[1 + s], num_layers, num_f_maps, num_classes, num_classes)
        for s in range(1, num_stages)
    ]
    return params


# ----------------------------------------------------------------------------
# Pure-JAX reference (for correctness check)
# ----------------------------------------------------------------------------

def _conv1d_ref(x, w_oik, b, dilation=1, padding=0):
    out = jax.lax.conv_general_dilated(
        x, w_oik, window_strides=(1,), padding=[(padding, padding)],
        rhs_dilation=(dilation,), dimension_numbers=("NCH", "OIH", "NCH"))
    return out + b.reshape(1, -1, 1)


def single_stage_ref(p, x):
    out = _conv1d_ref(x, p["w_in"][:, :, None], p["b_in"][:, 0])
    for lp in p["layers"]:
        d = lp["dilation"]
        w3_oik = jnp.transpose(lp["w3"], (1, 2, 0))     # (Cout, Cin, 3)
        h = jax.nn.relu(_conv1d_ref(out, w3_oik, lp["b3"][:, 0], dilation=d, padding=d))
        h = _conv1d_ref(h, lp["w1"][:, :, None], lp["b1"][:, 0])
        out = out + h                                    # dropout = identity (eval)
    return _conv1d_ref(out, p["w_out"][:, :, None], p["b_out"][:, 0])


def mstcn_ref(params, x):
    x = x * params["bn_scale"][None] + params["bn_shift"][None]
    out = single_stage_ref(params["stage1"], x)
    outputs = [out]
    for sp in params["stages"]:
        out = single_stage_ref(sp, out)
        outputs.append(out)
    return jnp.stack(outputs, axis=0)


# ----------------------------------------------------------------------------
# Main
# ----------------------------------------------------------------------------

if __name__ == "__main__":
    # Small shapes consistent with the module: BatchNorm1d(12) forces dim=12.
    num_stages, num_layers, num_f_maps, dim, num_classes = 2, 3, 32, 12, 8
    N, T = 2, 64          # N*T = 128 -> lane-dense activations in the kernel

    key = jax.random.PRNGKey(0)
    kp, kx = jax.random.split(key)
    params = init_mstcn(kp, num_stages, num_layers, num_f_maps, dim, num_classes)
    x = jax.random.normal(kx, (N, dim, T), dtype=jnp.float32)

    out = mstcn_forward(params, x)
    out = jax.block_until_ready(out)

    ref = mstcn_ref(params, x)
    assert out.shape == (num_stages, N, num_classes, T), out.shape
    # bf16 matmul operands (f32 accumulation) -> relaxed tolerance vs f32 reference.
    np.testing.assert_allclose(np.asarray(out), np.asarray(ref), rtol=2e-2, atol=2e-2)

    print("KERNEL_OK")
</pallas_src>

<mosaic_0001>
module attributes {stable_mosaic.version = 11 : i64} {
  func.func @kernel(%arg0: memref<12x128xf32, #tpu.memory_space<vmem>>, %arg1: memref<1x128xi32, #tpu.memory_space<vmem>>, %arg2: memref<32x12xbf16, #tpu.memory_space<vmem>>, %arg3: memref<32x1xf32, #tpu.memory_space<vmem>>, %arg4: memref<3x32x96xbf16, #tpu.memory_space<vmem>>, %arg5: memref<3x32x1xf32, #tpu.memory_space<vmem>>, %arg6: memref<3x32x32xbf16, #tpu.memory_space<vmem>>, %arg7: memref<3x32x1xf32, #tpu.memory_space<vmem>>, %arg8: memref<8x32xbf16, #tpu.memory_space<vmem>>, %arg9: memref<8x1xf32, #tpu.memory_space<vmem>>, %arg10: memref<32x8xbf16, #tpu.memory_space<vmem>>, %arg11: memref<32x1xf32, #tpu.memory_space<vmem>>, %arg12: memref<3x32x96xbf16, #tpu.memory_space<vmem>>, %arg13: memref<3x32x1xf32, #tpu.memory_space<vmem>>, %arg14: memref<3x32x32xbf16, #tpu.memory_space<vmem>>, %arg15: memref<3x32x1xf32, #tpu.memory_space<vmem>>, %arg16: memref<8x32xbf16, #tpu.memory_space<vmem>>, %arg17: memref<8x1xf32, #tpu.memory_space<vmem>>, %arg18: memref<2x8x128xf32, #tpu.memory_space<vmem>>) attributes {dimension_semantics = [], scalar_prefetch = 0 : i64, scratch_operands = 0 : i64, tpu.core_type = #tpu.core_type<tc>} {
    %c0 = arith.constant 0 : index
    %c0_0 = arith.constant 0 : index
    %0 = vector.load %arg1[%c0, %c0_0] : memref<1x128xi32, #tpu.memory_space<vmem>>, vector<1x128xi32>
    %c1_i32 = arith.constant 1 : i32
    %1 = vector.broadcast %c1_i32 : i32 to vector<1x128xi32>
    %2 = arith.cmpi sge, %0, %1 : vector<1x128xi32>
    %c2_i32 = arith.constant 2 : i32
    %3 = vector.broadcast %c2_i32 : i32 to vector<1x128xi32>
    %4 = arith.cmpi sge, %0, %3 : vector<1x128xi32>
    %c4_i32 = arith.constant 4 : i32
    %5 = vector.broadcast %c4_i32 : i32 to vector<1x128xi32>
    %6 = arith.cmpi sge, %0, %5 : vector<1x128xi32>
    %c63_i32 = arith.constant 63 : i32
    %7 = vector.broadcast %c63_i32 : i32 to vector<1x128xi32>
    %8 = arith.cmpi slt, %0, %7 : vector<1x128xi32>
    %c62_i32 = arith.constant 62 : i32
    %9 = vector.broadcast %c62_i32 : i32 to vector<1x128xi32>
    %10 = arith.cmpi slt, %0, %9 : vector<1x128xi32>
    %c60_i32 = arith.constant 60 : i32
    %11 = vector.broadcast %c60_i32 : i32 to vector<1x128xi32>
    %12 = arith.cmpi slt, %0, %11 : vector<1x128xi32>
    %c0_1 = arith.constant 0 : index
    %c0_2 = arith.constant 0 : index
    %13 = vector.load %arg0[%c0_1, %c0_2] : memref<12x128xf32, #tpu.memory_space<vmem>>, vector<12x128xf32>
    %c0_3 = arith.constant 0 : index
    %c0_4 = arith.constant 0 : index
    %14 = vector.load %arg2[%c0_3, %c0_4] : memref<32x12xbf16, #tpu.memory_space<vmem>>, vector<32x12xbf16>
    %15 = arith.truncf %13 : vector<12x128xf32> to vector<12x128xbf16>
    %cst = arith.constant dense<0.000000e+00> : vector<32x128xf32>
    %16 = tpu.matmul %14, %15, %cst {dimension_numbers = #tpu.dot_dimension_numbers<[1], [0], [0], [1], [0, 0, 1, 1], [], []>} : vector<32x12xbf16>, vector<12x128xbf16>, vector<32x128xf32> -> vector<32x128xf32>
    %c0_5 = arith.constant 0 : index
    %c0_6 = arith.constant 0 : index
    %17 = vector.load %arg3[%c0_5, %c0_6] : memref<32x1xf32, #tpu.memory_space<vmem>>, vector<32x1xf32>
    %18 = vector.broadcast %17 : vector<32x1xf32> to vector<32x128xf32>
    %19 = arith.addf %16, %18 : vector<32x128xf32>
    %c1_i32_7 = arith.constant 1 : i32
    %20 = tpu.dynamic_rotate %19 by %c1_i32_7 dim 1 : vector<32x128xf32>, i32 -> vector<32x128xf32>
    %cst_8 = arith.constant 0.000000e+00 : f32
    %21 = vector.shape_cast %2 : vector<1x128xi1> to vector<1x128xi1>
    %22 = vector.broadcast %21 : vector<1x128xi1> to vector<32x128xi1>
    %23 = vector.broadcast %cst_8 : f32 to vector<32x128xf32>
    %24 = arith.select %22, %20, %23 : vector<32x128xi1>, vector<32x128xf32>
    %c127_i32 = arith.constant 127 : i32
    %25 = tpu.dynamic_rotate %19 by %c127_i32 dim 1 : vector<32x128xf32>, i32 -> vector<32x128xf32>
    %cst_9 = arith.constant 0.000000e+00 : f32
    %26 = vector.shape_cast %8 : vector<1x128xi1> to vector<1x128xi1>
    %27 = vector.broadcast %26 : vector<1x128xi1> to vector<32x128xi1>
    %28 = vector.broadcast %cst_9 : f32 to vector<32x128xf32>
    %29 = arith.select %27, %25, %28 : vector<32x128xi1>, vector<32x128xf32>
    %30 = tpu.concatenate %24, %19, %29 in 0 : vector<32x128xf32>, vector<32x128xf32>, vector<32x128xf32> -> vector<96x128xf32>
    %c0_10 = arith.constant 0 : index
    %c0_11 = arith.constant 0 : index
    %c0_12 = arith.constant 0 : index
    %31 = vector.load %arg4[%c0_10, %c0_11, %c0_12] : memref<3x32x96xbf16, #tpu.memory_space<vmem>>, vector<1x32x96xbf16>
    %32 = vector.shape_cast %31 : vector<1x32x96xbf16> to vector<32x96xbf16>
    %33 = arith.truncf %30 : vector<96x128xf32> to vector<96x128xbf16>
    %cst_13 = arith.constant dense<0.000000e+00> : vector<32x128xf32>
    %34 = tpu.matmul %32, %33, %cst_13 {dimension_numbers = #tpu.dot_dimension_numbers<[1], [0], [0], [1], [0, 0, 1, 1], [], []>} : vector<32x96xbf16>, vector<96x128xbf16>, vector<32x128xf32> -> vector<32x128xf32>
    %c0_14 = arith.constant 0 : index
    %c0_15 = arith.constant 0 : index
    %c0_16 = arith.constant 0 : index
    %35 = vector.load %arg5[%c0_14, %c0_15, %c0_16] : memref<3x32x1xf32, #tpu.memory_space<vmem>>, vector<1x32x1xf32>
    %36 = vector.shape_cast %35 : vector<1x32x1xf32> to vector<32x1xf32>
    %37 = vector.broadcast %36 : vector<32x1xf32> to vector<32x128xf32>
    %38 = arith.addf %34, %37 : vector<32x128xf32>
    %cst_17 = arith.constant 0.000000e+00 : f32
    %39 = vector.broadcast %cst_17 : f32 to vector<32x128xf32>
    %40 = arith.maximumf %38, %39 : vector<32x128xf32>
    %c0_18 = arith.constant 0 : index
    %c0_19 = arith.constant 0 : index
    %c0_20 = arith.constant 0 : index
    %41 = vector.load %arg6[%c0_18, %c0_19, %c0_20] : memref<3x32x32xbf16, #tpu.memory_space<vmem>>, vector<1x32x32xbf16>
    %42 = vector.shape_cast %41 : vector<1x32x32xbf16> to vector<32x32xbf16>
    %43 = arith.truncf %40 : vector<32x128xf32> to vector<32x128xbf16>
    %cst_21 = arith.constant dense<0.000000e+00> : vector<32x128xf32>
    %44 = tpu.matmul %42, %43, %cst_21 {dimension_numbers = #tpu.dot_dimension_numbers<[1], [0], [0], [1], [0, 0, 1, 1], [], []>} : vector<32x32xbf16>, vector<32x128xbf16>, vector<32x128xf32> -> vector<32x128xf32>
    %45 = arith.addf %19, %44 : vector<32x128xf32>
    %c0_22 = arith.constant 0 : index
    %c0_23 = arith.constant 0 : index
    %c0_24 = arith.constant 0 : index
    %46 = vector.load %arg7[%c0_22, %c0_23, %c0_24] : memref<3x32x1xf32, #tpu.memory_space<vmem>>, vector<1x32x1xf32>
    %47 = vector.shape_cast %46 : vector<1x32x1xf32> to vector<32x1xf32>
    %48 = vector.broadcast %47 : vector<32x1xf32> to vector<32x128xf32>
    %49 = arith.addf %45, %48 : vector<32x128xf32>
    %c2_i32_25 = arith.constant 2 : i32
    %50 = tpu.dynamic_rotate %49 by %c2_i32_25 dim 1 : vector<32x128xf32>, i32 -> vector<32x128xf32>
    %cst_26 = arith.constant 0.000000e+00 : f32
    %51 = vector.shape_cast %4 : vector<1x128xi1> to vector<1x128xi1>
    %52 = vector.broadcast %51 : vector<1x128xi1> to vector<32x128xi1>
    %53 = vector.broadcast %cst_26 : f32 to vector<32x128xf32>
    %54 = arith.select %52, %50, %53 : vector<32x128xi1>, vector<32x128xf32>
    %c126_i32 = arith.constant 126 : i32
    %55 = tpu.dynamic_rotate %49 by %c126_i32 dim 1 : vector<32x128xf32>, i32 -> vector<32x128xf32>
    %cst_27 = arith.constant 0.000000e+00 : f32
    %56 = vector.shape_cast %10 : vector<1x128xi1> to vector<1x128xi1>
    %57 = vector.broadcast %56 : vector<1x128xi1> to vector<32x128xi1>
    %58 = vector.broadcast %cst_27 : f32 to vector<32x128xf32>
    %59 = arith.select %57, %55, %58 : vector<32x128xi1>, vector<32x128xf32>
    %60 = tpu.concatenate %54, %49, %59 in 0 : vector<32x128xf32>, vector<32x128xf32>, vector<32x128xf32> -> vector<96x128xf32>
    %c1 = arith.constant 1 : index
    %c0_28 = arith.constant 0 : index
    %c0_29 = arith.constant 0 : index
    %61 = vector.load %arg4[%c1, %c0_28, %c0_29] : memref<3x32x96xbf16, #tpu.memory_space<vmem>>, vector<1x32x96xbf16>
    %62 = vector.shape_cast %61 : vector<1x32x96xbf16> to vector<32x96xbf16>
    %63 = arith.truncf %60 : vector<96x128xf32> to vector<96x128xbf16>
    %cst_30 = arith.constant dense<0.000000e+00> : vector<32x128xf32>
    %64 = tpu.matmul %62, %63, %cst_30 {dimension_numbers = #tpu.dot_dimension_numbers<[1], [0], [0], [1], [0, 0, 1, 1], [], []>} : vector<32x96xbf16>, vector<96x128xbf16>, vector<32x128xf32> -> vector<32x128xf32>
    %c1_31 = arith.constant 1 : index
    %c0_32 = arith.constant 0 : index
    %c0_33 = arith.constant 0 : index
    %65 = vector.load %arg5[%c1_31, %c0_32, %c0_33] : memref<3x32x1xf32, #tpu.memory_space<vmem>>, vector<1x32x1xf32>
    %66 = vector.shape_cast %65 : vector<1x32x1xf32> to vector<32x1xf32>
    %67 = vector.broadcast %66 : vector<32x1xf32> to vector<32x128xf32>
    %68 = arith.addf %64, %67 : vector<32x128xf32>
    %cst_34 = arith.constant 0.000000e+00 : f32
    %69 = vector.broadcast %cst_34 : f32 to vector<32x128xf32>
    %70 = arith.maximumf %68, %69 : vector<32x128xf32>
    %c1_35 = arith.constant 1 : index
    %c0_36 = arith.constant 0 : index
    %c0_37 = arith.constant 0 : index
    %71 = vector.load %arg6[%c1_35, %c0_36, %c0_37] : memref<3x32x32xbf16, #tpu.memory_space<vmem>>, vector<1x32x32xbf16>
    %72 = vector.shape_cast %71 : vector<1x32x32xbf16> to vector<32x32xbf16>
    %73 = arith.truncf %70 : vector<32x128xf32> to vector<32x128xbf16>
    %cst_38 = arith.constant dense<0.000000e+00> : vector<32x128xf32>
    %74 = tpu.matmul %72, %73, %cst_38 {dimension_numbers = #tpu.dot_dimension_numbers<[1], [0], [0], [1], [0, 0, 1, 1], [], []>} : vector<32x32xbf16>, vector<32x128xbf16>, vector<32x128xf32> -> vector<32x128xf32>
    %75 = arith.addf %49, %74 : vector<32x128xf32>
    %c1_39 = arith.constant 1 : index
    %c0_40 = arith.constant 0 : index
    %c0_41 = arith.constant 0 : index
    %76 = vector.load %arg7[%c1_39, %c0_40, %c0_41] : memref<3x32x1xf32, #tpu.memory_space<vmem>>, vector<1x32x1xf32>
    %77 = vector.shape_cast %76 : vector<1x32x1xf32> to vector<32x1xf32>
    %78 = vector.broadcast %77 : vector<32x1xf32> to vector<32x128xf32>
    %79 = arith.addf %75, %78 : vector<32x128xf32>
    %c4_i32_42 = arith.constant 4 : i32
    %80 = tpu.dynamic_rotate %79 by %c4_i32_42 dim 1 : vector<32x128xf32>, i32 -> vector<32x128xf32>
    %cst_43 = arith.constant 0.000000e+00 : f32
    %81 = vector.shape_cast %6 : vector<1x128xi1> to vector<1x128xi1>
    %82 = vector.broadcast %81 : vector<1x128xi1> to vector<32x128xi1>
    %83 = vector.broadcast %cst_43 : f32 to vector<32x128xf32>
    %84 = arith.select %82, %80, %83 : vector<32x128xi1>, vector<32x128xf32>
    %c124_i32 = arith.constant 124 : i32
    %85 = tpu.dynamic_rotate %79 by %c124_i32 dim 1 : vector<32x128xf32>, i32 -> vector<32x128xf32>
    %cst_44 = arith.constant 0.000000e+00 : f32
    %86 = vector.shape_cast %12 : vector<1x128xi1> to vector<1x128xi1>
    %87 = vector.broadcast %86 : vector<1x128xi1> to vector<32x128xi1>
    %88 = vector.broadcast %cst_44 : f32 to vector<32x128xf32>
    %89 = arith.select %87, %85, %88 : vector<32x128xi1>, vector<32x128xf32>
    %90 = tpu.concatenate %84, %79, %89 in 0 : vector<32x128xf32>, vector<32x128xf32>, vector<32x128xf32> -> vector<96x128xf32>
    %c2 = arith.constant 2 : index
    %c0_45 = arith.constant 0 : index
    %c0_46 = arith.constant 0 : index
    %91 = vector.load %arg4[%c2, %c0_45, %c0_46] : memref<3x32x96xbf16, #tpu.memory_space<vmem>>, vector<1x32x96xbf16>
    %92 = vector.shape_cast %91 : vector<1x32x96xbf16> to vector<32x96xbf16>
    %93 = arith.truncf %90 : vector<96x128xf32> to vector<96x128xbf16>
    %cst_47 = arith.constant dense<0.000000e+00> : vector<32x128xf32>
    %94 = tpu.matmul %92, %93, %cst_47 {dimension_numbers = #tpu.dot_dimension_numbers<[1], [0], [0], [1], [0, 0, 1, 1], [], []>} : vector<32x96xbf16>, vector<96x128xbf16>, vector<32x128xf32> -> vector<32x128xf32>
    %c2_48 = arith.constant 2 : index
    %c0_49 = arith.constant 0 : index
    %c0_50 = arith.constant 0 : index
    %95 = vector.load %arg5[%c2_48, %c0_49, %c0_50] : memref<3x32x1xf32, #tpu.memory_space<vmem>>, vector<1x32x1xf32>
    %96 = vector.shape_cast %95 : vector<1x32x1xf32> to vector<32x1xf32>
    %97 = vector.broadcast %96 : vector<32x1xf32> to vector<32x128xf32>
    %98 = arith.addf %94, %97 : vector<32x128xf32>
    %cst_51 = arith.constant 0.000000e+00 : f32
    %99 = vector.broadcast %cst_51 : f32 to vector<32x128xf32>
    %100 = arith.maximumf %98, %99 : vector<32x128xf32>
    %c2_52 = arith.constant 2 : index
    %c0_53 = arith.constant 0 : index
    %c0_54 = arith.constant 0 : index
    %101 = vector.load %arg6[%c2_52, %c0_53, %c0_54] : memref<3x32x32xbf16, #tpu.memory_space<vmem>>, vector<1x32x32xbf16>
    %102 = vector.shape_cast %101 : vector<1x32x32xbf16> to vector<32x32xbf16>
    %103 = arith.truncf %100 : vector<32x128xf32> to vector<32x128xbf16>
    %cst_55 = arith.constant dense<0.000000e+00> : vector<32x128xf32>
    %104 = tpu.matmul %102, %103, %cst_55 {dimension_numbers = #tpu.dot_dimension_numbers<[1], [0], [0], [1], [0, 0, 1, 1], [], []>} : vector<32x32xbf16>, vector<32x128xbf16>, vector<32x128xf32> -> vector<32x128xf32>
    %105 = arith.addf %79, %104 : vector<32x128xf32>
    %c2_56 = arith.constant 2 : index
    %c0_57 = arith.constant 0 : index
    %c0_58 = arith.constant 0 : index
    %106 = vector.load %arg7[%c2_56, %c0_57, %c0_58] : memref<3x32x1xf32, #tpu.memory_space<vmem>>, vector<1x32x1xf32>
    %107 = vector.shape_cast %106 : vector<1x32x1xf32> to vector<32x1xf32>
    %108 = vector.broadcast %107 : vector<32x1xf32> to vector<32x128xf32>
    %109 = arith.addf %105, %108 : vector<32x128xf32>
    %c0_59 = arith.constant 0 : index
    %c0_60 = arith.constant 0 : index
    %110 = vector.load %arg8[%c0_59, %c0_60] : memref<8x32xbf16, #tpu.memory_space<vmem>>, vector<8x32xbf16>
    %111 = arith.truncf %109 : vector<32x128xf32> to vector<32x128xbf16>
    %cst_61 = arith.constant dense<0.000000e+00> : vector<8x128xf32>
    %112 = tpu.matmul %110, %111, %cst_61 {dimension_numbers = #tpu.dot_dimension_numbers<[1], [0], [0], [1], [0, 0, 1, 1], [], []>} : vector<8x32xbf16>, vector<32x128xbf16>, vector<8x128xf32> -> vector<8x128xf32>
    %c0_62 = arith.constant 0 : index
    %c0_63 = arith.constant 0 : index
    %113 = vector.load %arg9[%c0_62, %c0_63] : memref<8x1xf32, #tpu.memory_space<vmem>>, vector<8x1xf32>
    %114 = vector.broadcast %113 : vector<8x1xf32> to vector<8x128xf32>
    %115 = arith.addf %112, %114 : vector<8x128xf32>
    %c0_64 = arith.constant 0 : index
    %c0_65 = arith.constant 0 : index
    %c0_66 = arith.constant 0 : index
    %116 = vector.load %arg18[%c0_64, %c0_65, %c0_66] : memref<2x8x128xf32, #tpu.memory_space<vmem>>, vector<1x8x128xf32>
    %117 = vector.shape_cast %116 : vector<1x8x128xf32> to vector<8x128xf32>
    %118 = vector.shape_cast %115 : vector<8x128xf32> to vector<1x8x128xf32>
    tpu.vector_store %arg18[%c0_64, %c0_65, %c0_66], %118 {strides = array<i32>} : memref<2x8x128xf32, #tpu.memory_space<vmem>>, vector<1x8x128xf32>,
    %c0_67 = arith.constant 0 : index
    %c0_68 = arith.constant 0 : index
    %119 = vector.load %arg10[%c0_67, %c0_68] : memref<32x8xbf16, #tpu.memory_space<vmem>>, vector<32x8xbf16>
    %120 = arith.truncf %115 : vector<8x128xf32> to vector<8x128xbf16>
    %cst_69 = arith.constant dense<0.000000e+00> : vector<32x128xf32>
    %121 = tpu.matmul %119, %120, %cst_69 {dimension_numbers = #tpu.dot_dimension_numbers<[1], [0], [0], [1], [0, 0, 1, 1], [], []>} : vector<32x8xbf16>, vector<8x128xbf16>, vector<32x128xf32> -> vector<32x128xf32>
    %c0_70 = arith.constant 0 : index
    %c0_71 = arith.constant 0 : index
    %122 = vector.load %arg11[%c0_70, %c0_71] : memref<32x1xf32, #tpu.memory_space<vmem>>, vector<32x1xf32>
    %123 = vector.broadcast %122 : vector<32x1xf32> to vector<32x128xf32>
    %124 = arith.addf %121, %123 : vector<32x128xf32>
    %c1_i32_72 = arith.constant 1 : i32
    %125 = tpu.dynamic_rotate %124 by %c1_i32_72 dim 1 : vector<32x128xf32>, i32 -> vector<32x128xf32>
    %cst_73 = arith.constant 0.000000e+00 : f32
    %126 = vector.shape_cast %2 : vector<1x128xi1> to vector<1x128xi1>
    %127 = vector.broadcast %126 : vector<1x128xi1> to vector<32x128xi1>
    %128 = vector.broadcast %cst_73 : f32 to vector<32x128xf32>
    %129 = arith.select %127, %125, %128 : vector<32x128xi1>, vector<32x128xf32>
    %c127_i32_74 = arith.constant 127 : i32
    %130 = tpu.dynamic_rotate %124 by %c127_i32_74 dim 1 : vector<32x128xf32>, i32 -> vector<32x128xf32>
    %cst_75 = arith.constant 0.000000e+00 : f32
    %131 = vector.shape_cast %8 : vector<1x128xi1> to vector<1x128xi1>
    %132 = vector.broadcast %131 : vector<1x128xi1> to vector<32x128xi1>
    %133 = vector.broadcast %cst_75 : f32 to vector<32x128xf32>
    %134 = arith.select %132, %130, %133 : vector<32x128xi1>, vector<32x128xf32>
    %135 = tpu.concatenate %129, %124, %134 in 0 : vector<32x128xf32>, vector<32x128xf32>, vector<32x128xf32> -> vector<96x128xf32>
    %c0_76 = arith.constant 0 : index
    %c0_77 = arith.constant 0 : index
    %c0_78 = arith.constant 0 : index
    %136 = vector.load %arg12[%c0_76, %c0_77, %c0_78] : memref<3x32x96xbf16, #tpu.memory_space<vmem>>, vector<1x32x96xbf16>
    %137 = vector.shape_cast %136 : vector<1x32x96xbf16> to vector<32x96xbf16>
    %138 = arith.truncf %135 : vector<96x128xf32> to vector<96x128xbf16>
    %cst_79 = arith.constant dense<0.000000e+00> : vector<32x128xf32>
    %139 = tpu.matmul %137, %138, %cst_79 {dimension_numbers = #tpu.dot_dimension_numbers<[1], [0], [0], [1], [0, 0, 1, 1], [], []>} : vector<32x96xbf16>, vector<96x128xbf16>, vector<32x128xf32> -> vector<32x128xf32>
    %c0_80 = arith.constant 0 : index
    %c0_81 = arith.constant 0 : index
    %c0_82 = arith.constant 0 : index
    %140 = vector.load %arg13[%c0_80, %c0_81, %c0_82] : memref<3x32x1xf32, #tpu.memory_space<vmem>>, vector<1x32x1xf32>
    %141 = vector.shape_cast %140 : vector<1x32x1xf32> to vector<32x1xf32>
    %142 = vector.broadcast %141 : vector<32x1xf32> to vector<32x128xf32>
    %143 = arith.addf %139, %142 : vector<32x128xf32>
    %cst_83 = arith.constant 0.000000e+00 : f32
    %144 = vector.broadcast %cst_83 : f32 to vector<32x128xf32>
    %145 = arith.maximumf %143, %144 : vector<32x128xf32>
    %c0_84 = arith.constant 0 : index
    %c0_85 = arith.constant 0 : index
    %c0_86 = arith.constant 0 : index
    %146 = vector.load %arg14[%c0_84, %c0_85, %c0_86] : memref<3x32x32xbf16, #tpu.memory_space<vmem>>, vector<1x32x32xbf16>
    %147 = vector.shape_cast %146 : vector<1x32x32xbf16> to vector<32x32xbf16>
    %148 = arith.truncf %145 : vector<32x128xf32> to vector<32x128xbf16>
    %cst_87 = arith.constant dense<0.000000e+00> : vector<32x128xf32>
    %149 = tpu.matmul %147, %148, %cst_87 {dimension_numbers = #tpu.dot_dimension_numbers<[1], [0], [0], [1], [0, 0, 1, 1], [], []>} : vector<32x32xbf16>, vector<32x128xbf16>, vector<32x128xf32> -> vector<32x128xf32>
    %150 = arith.addf %124, %149 : vector<32x128xf32>
    %c0_88 = arith.constant 0 : index
    %c0_89 = arith.constant 0 : index
    %c0_90 = arith.constant 0 : index
    %151 = vector.load %arg15[%c0_88, %c0_89, %c0_90] : memref<3x32x1xf32, #tpu.memory_space<vmem>>, vector<1x32x1xf32>
    %152 = vector.shape_cast %151 : vector<1x32x1xf32> to vector<32x1xf32>
    %153 = vector.broadcast %152 : vector<32x1xf32> to vector<32x128xf32>
    %154 = arith.addf %150, %153 : vector<32x128xf32>
    %c2_i32_91 = arith.constant 2 : i32
    %155 = tpu.dynamic_rotate %154 by %c2_i32_91 dim 1 : vector<32x128xf32>, i32 -> vector<32x128xf32>
    %cst_92 = arith.constant 0.000000e+00 : f32
    %156 = vector.shape_cast %4 : vector<1x128xi1> to vector<1x128xi1>
    %157 = vector.broadcast %156 : vector<1x128xi1> to vector<32x128xi1>
    %158 = vector.broadcast %cst_92 : f32 to vector<32x128xf32>
    %159 = arith.select %157, %155, %158 : vector<32x128xi1>, vector<32x128xf32>
    %c126_i32_93 = arith.constant 126 : i32
    %160 = tpu.dynamic_rotate %154 by %c126_i32_93 dim 1 : vector<32x128xf32>, i32 -> vector<32x128xf32>
    %cst_94 = arith.constant 0.000000e+00 : f32
    %161 = vector.shape_cast %10 : vector<1x128xi1> to vector<1x128xi1>
    %162 = vector.broadcast %161 : vector<1x128xi1> to vector<32x128xi1>
    %163 = vector.broadcast %cst_94 : f32 to vector<32x128xf32>
    %164 = arith.select %162, %160, %163 : vector<32x128xi1>, vector<32x128xf32>
    %165 = tpu.concatenate %159, %154, %164 in 0 : vector<32x128xf32>, vector<32x128xf32>, vector<32x128xf32> -> vector<96x128xf32>
    %c1_95 = arith.constant 1 : index
    %c0_96 = arith.constant 0 : index
    %c0_97 = arith.constant 0 : index
    %166 = vector.load %arg12[%c1_95, %c0_96, %c0_97] : memref<3x32x96xbf16, #tpu.memory_space<vmem>>, vector<1x32x96xbf16>
    %167 = vector.shape_cast %166 : vector<1x32x96xbf16> to vector<32x96xbf16>
    %168 = arith.truncf %165 : vector<96x128xf32> to vector<96x128xbf16>
    %cst_98 = arith.constant dense<0.000000e+00> : vector<32x128xf32>
    %169 = tpu.matmul %167, %168, %cst_98 {dimension_numbers = #tpu.dot_dimension_numbers<[1], [0], [0], [1], [0, 0, 1, 1], [], []>} : vector<32x96xbf16>, vector<96x128xbf16>, vector<32x128xf32> -> vector<32x128xf32>
    %c1_99 = arith.constant 1 : index
    %c0_100 = arith.constant 0 : index
    %c0_101 = arith.constant 0 : index
    %170 = vector.load %arg13[%c1_99, %c0_100, %c0_101] : memref<3x32x1xf32, #tpu.memory_space<vmem>>, vector<1x32x1xf32>
    %171 = vector.shape_cast %170 : vector<1x32x1xf32> to vector<32x1xf32>
    %172 = vector.broadcast %171 : vector<32x1xf32> to vector<32x128xf32>
    %173 = arith.addf %169, %172 : vector<32x128xf32>
    %cst_102 = arith.constant 0.000000e+00 : f32
    %174 = vector.broadcast %cst_102 : f32 to vector<32x128xf32>
    %175 = arith.maximumf %173, %174 : vector<32x128xf32>
    %c1_103 = arith.constant 1 : index
    %c0_104 = arith.constant 0 : index
    %c0_105 = arith.constant 0 : index
    %176 = vector.load %arg14[%c1_103, %c0_104, %c0_105] : memref<3x32x32xbf16, #tpu.memory_space<vmem>>, vector<1x32x32xbf16>
    %177 = vector.shape_cast %176 : vector<1x32x32xbf16> to vector<32x32xbf16>
    %178 = arith.truncf %175 : vector<32x128xf32> to vector<32x128xbf16>
    %cst_106 = arith.constant dense<0.000000e+00> : vector<32x128xf32>
    %179 = tpu.matmul %177, %178, %cst_106 {dimension_numbers = #tpu.dot_dimension_numbers<[1], [0], [0], [1], [0, 0, 1, 1], [], []>} : vector<32x32xbf16>, vector<32x128xbf16>, vector<32x128xf32> -> vector<32x128xf32>
    %180 = arith.addf %154, %179 : vector<32x128xf32>
    %c1_107 = arith.constant 1 : index
    %c0_108 = arith.constant 0 : index
    %c0_109 = arith.constant 0 : index
    %181 = vector.load %arg15[%c1_107, %c0_108, %c0_109] : memref<3x32x1xf32, #tpu.memory_space<vmem>>, vector<1x32x1xf32>
    %182 = vector.shape_cast %181 : vector<1x32x1xf32> to vector<32x1xf32>
    %183 = vector.broadcast %182 : vector<32x1xf32> to vector<32x128xf32>
    %184 = arith.addf %180, %183 : vector<32x128xf32>
    %c4_i32_110 = arith.constant 4 : i32
    %185 = tpu.dynamic_rotate %184 by %c4_i32_110 dim 1 : vector<32x128xf32>, i32 -> vector<32x128xf32>
    %cst_111 = arith.constant 0.000000e+00 : f32
    %186 = vector.shape_cast %6 : vector<1x128xi1> to vector<1x128xi1>
    %187 = vector.broadcast %186 : vector<1x128xi1> to vector<32x128xi1>
    %188 = vector.broadcast %cst_111 : f32 to vector<32x128xf32>
    %189 = arith.select %187, %185, %188 : vector<32x128xi1>, vector<32x128xf32>
    %c124_i32_112 = arith.constant 124 : i32
    %190 = tpu.dynamic_rotate %184 by %c124_i32_112 dim 1 : vector<32x128xf32>, i32 -> vector<32x128xf32>
    %cst_113 = arith.constant 0.000000e+00 : f32
    %191 = vector.shape_cast %12 : vector<1x128xi1> to vector<1x128xi1>
    %192 = vector.broadcast %191 : vector<1x128xi1> to vector<32x128xi1>
    %193 = vector.broadcast %cst_113 : f32 to vector<32x128xf32>
    %194 = arith.select %192, %190, %193 : vector<32x128xi1>, vector<32x128xf32>
    %195 = tpu.concatenate %189, %184, %194 in 0 : vector<32x128xf32>, vector<32x128xf32>, vector<32x128xf32> -> vector<96x128xf32>
    %c2_114 = arith.constant 2 : index
    %c0_115 = arith.constant 0 : index
    %c0_116 = arith.constant 0 : index
    %196 = vector.load %arg12[%c2_114, %c0_115, %c0_116] : memref<3x32x96xbf16, #tpu.memory_space<vmem>>, vector<1x32x96xbf16>
    %197 = vector.shape_cast %196 : vector<1x32x96xbf16> to vector<32x96xbf16>
    %198 = arith.truncf %195 : vector<96x128xf32> to vector<96x128xbf16>
    %cst_117 = arith.constant dense<0.000000e+00> : vector<32x128xf32>
    %199 = tpu.matmul %197, %198, %cst_117 {dimension_numbers = #tpu.dot_dimension_numbers<[1], [0], [0], [1], [0, 0, 1, 1], [], []>} : vector<32x96xbf16>, vector<96x128xbf16>, vector<32x128xf32> -> vector<32x128xf32>
    %c2_118 = arith.constant 2 : index
    %c0_119 = arith.constant 0 : index
    %c0_120 = arith.constant 0 : index
    %200 = vector.load %arg13[%c2_118, %c0_119, %c0_120] : memref<3x32x1xf32, #tpu.memory_space<vmem>>, vector<1x32x1xf32>
    %201 = vector.shape_cast %200 : vector<1x32x1xf32> to vector<32x1xf32>
    %202 = vector.broadcast %201 : vector<32x1xf32> to vector<32x128xf32>
    %203 = arith.addf %199, %202 : vector<32x128xf32>
    %cst_121 = arith.constant 0.000000e+00 : f32
    %204 = vector.broadcast %cst_121 : f32 to vector<32x128xf32>
    %205 = arith.maximumf %203, %204 : vector<32x128xf32>
    %c2_122 = arith.constant 2 : index
    %c0_123 = arith.constant 0 : index
    %c0_124 = arith.constant 0 : index
    %206 = vector.load %arg14[%c2_122, %c0_123, %c0_124] : memref<3x32x32xbf16, #tpu.memory_space<vmem>>, vector<1x32x32xbf16>
    %207 = vector.shape_cast %206 : vector<1x32x32xbf16> to vector<32x32xbf16>
    %208 = arith.truncf %205 : vector<32x128xf32> to vector<32x128xbf16>
    %cst_125 = arith.constant dense<0.000000e+00> : vector<32x128xf32>
    %209 = tpu.matmul %207, %208, %cst_125 {dimension_numbers = #tpu.dot_dimension_numbers<[1], [0], [0], [1], [0, 0, 1, 1], [], []>} : vector<32x32xbf16>, vector<32x128xbf16>, vector<32x128xf32> -> vector<32x128xf32>
    %210 = arith.addf %184, %209 : vector<32x128xf32>
    %c2_126 = arith.constant 2 : index
    %c0_127 = arith.constant 0 : index
    %c0_128 = arith.constant 0 : index
    %211 = vector.load %arg15[%c2_126, %c0_127, %c0_128] : memref<3x32x1xf32, #tpu.memory_space<vmem>>, vector<1x32x1xf32>
    %212 = vector.shape_cast %211 : vector<1x32x1xf32> to vector<32x1xf32>
    %213 = vector.broadcast %212 : vector<32x1xf32> to vector<32x128xf32>
    %214 = arith.addf %210, %213 : vector<32x128xf32>
    %c0_129 = arith.constant 0 : index
    %c0_130 = arith.constant 0 : index
    %215 = vector.load %arg16[%c0_129, %c0_130] : memref<8x32xbf16, #tpu.memory_space<vmem>>, vector<8x32xbf16>
    %216 = arith.truncf %214 : vector<32x128xf32> to vector<32x128xbf16>
    %cst_131 = arith.constant dense<0.000000e+00> : vector<8x128xf32>
    %217 = tpu.matmul %215, %216, %cst_131 {dimension_numbers = #tpu.dot_dimension_numbers<[1], [0], [0], [1], [0, 0, 1, 1], [], []>} : vector<8x32xbf16>, vector<32x128xbf16>, vector<8x128xf32> -> vector<8x128xf32>
    %c0_132 = arith.constant 0 : index
    %c0_133 = arith.constant 0 : index
    %218 = vector.load %arg17[%c0_132, %c0_133] : memref<8x1xf32, #tpu.memory_space<vmem>>, vector<8x1xf32>
    %219 = vector.broadcast %218 : vector<8x1xf32> to vector<8x128xf32>
    %220 = arith.addf %217, %219 : vector<8x128xf32>
    %c1_134 = arith.constant 1 : index
    %c0_135 = arith.constant 0 : index
    %c0_136 = arith.constant 0 : index
    %221 = vector.load %arg18[%c1_134, %c0_135, %c0_136] : memref<2x8x128xf32, #tpu.memory_space<vmem>>, vector<1x8x128xf32>
    %222 = vector.shape_cast %221 : vector<1x8x128xf32> to vector<8x128xf32>
    %223 = vector.shape_cast %220 : vector<8x128xf32> to vector<1x8x128xf32>
    tpu.vector_store %arg18[%c1_134, %c0_135, %c0_136], %223 {strides = array<i32>} : memref<2x8x128xf32, #tpu.memory_space<vmem>>, vector<1x8x128xf32>,
    return
  }
}

</mosaic_0001>

<llo_original>
// kernel: tpu_custom_call.1
$region0: #{tpu_custom_call.1}
  #allocation0 [shape = 'u32[]', space=smem, size = 0x4, offset = 0x4, fixed_abs, tag = 'smem constant byte address 0x4 - core index']
  #allocation1 [shape = 'u32[144,128]{1,0:T(1,128)}', space=vmem, size = 0x12000, scoped, tag = 'internal scratch']
  %s0 = inlined_call_operand.vmem [shape: f32[12,128], index: 0, kind: input, shape index: {}]
  %s1 = inlined_call_operand.vmem [shape: s32[1,128], index: 1, kind: input, shape index: {}]
  %s2 = inlined_call_operand.vmem [shape: bf16[32,12], index: 2, kind: input, shape index: {}]
  %s3 = inlined_call_operand.vmem [shape: f32[32,1], index: 3, kind: input, shape index: {}]
  %s4 = inlined_call_operand.vmem [shape: bf16[3,32,96], index: 4, kind: input, shape index: {}]
  %s5 = inlined_call_operand.vmem [shape: f32[3,32,1], index: 5, kind: input, shape index: {}]
  %s6 = inlined_call_operand.vmem [shape: bf16[3,32,32], index: 6, kind: input, shape index: {}]
  %s7 = inlined_call_operand.vmem [shape: f32[3,32,1], index: 7, kind: input, shape index: {}]
  %s8 = inlined_call_operand.vmem [shape: bf16[8,32], index: 8, kind: input, shape index: {}]
  %s9 = inlined_call_operand.vmem [shape: f32[8,1], index: 9, kind: input, shape index: {}]
  %s10 = inlined_call_operand.vmem [shape: bf16[32,8], index: 10, kind: input, shape index: {}]
  %s11 = inlined_call_operand.vmem [shape: f32[32,1], index: 11, kind: input, shape index: {}]
  %s12 = inlined_call_operand.vmem [shape: bf16[3,32,96], index: 12, kind: input, shape index: {}]
  %s13 = inlined_call_operand.vmem [shape: f32[3,32,1], index: 13, kind: input, shape index: {}]
  %s14 = inlined_call_operand.vmem [shape: bf16[3,32,32], index: 14, kind: input, shape index: {}]
  %s15 = inlined_call_operand.vmem [shape: f32[3,32,1], index: 15, kind: input, shape index: {}]
  %s16 = inlined_call_operand.vmem [shape: bf16[8,32], index: 16, kind: input, shape index: {}]
  %s17 = inlined_call_operand.vmem [shape: f32[8,1], index: 17, kind: input, shape index: {}]
  %s18 = inlined_call_operand.hbm [shape: f32[2,8,128], index: 18, kind: output, shape index: {}]
  %s19 = sld [smem:[#allocation0]]
  $region82: #{tpu_custom_call.1} parent=0
    _
  %s21 = ssub.s32 1, %s19
  %s22 = scalar_select 0, %s21, %s19
  $region1: #{tpu_custom_call.1} parent=0
    #allocation2 [shape = 'u8[8192]{0}', space=vmem, size = 0x2000, scoped, tag = 'output window, operand 0, single buffered']
    #allocation3 [shape = 's32[1]{0}', space=sflag, size = 0x4, scoped, tag = 'scoped memory for tpu_custom_call.1']
    %23 = vsyncpa [#allocation3], 0
    // Predicated region
    $region2: #{tpu_custom_call.1} parent=1 // pred_check
      _
    $region3: #{tpu_custom_call.1} parent=1 // pred_check_branch
      %25 = sbr.rel (0) target = $region5
    $region4: #{tpu_custom_call.1} parent=1 // pred_region
      _
    $region5: #{tpu_custom_call.1} parent=1 // pred_fallthru
      _
    // Predicated region
    $region6: #{tpu_custom_call.1} parent=1 // pred_check
      _
    $region7: #{tpu_custom_call.1} parent=1 // pred_check_branch
      %27 = sbr.rel (0) target = $region9
    $region8: #{tpu_custom_call.1} parent=1 // pred_region
      _
    $region9: #{tpu_custom_call.1} parent=1 // pred_fallthru
      _
    // Predicated region
    $region10: #{tpu_custom_call.1} parent=1 // pred_check
      _
    $region11: #{tpu_custom_call.1} parent=1 // pred_check_branch
      %29 = sbr.rel (0) target = $region13
    $region12: #{tpu_custom_call.1} parent=1 // pred_region
      _
    $region13: #{tpu_custom_call.1} parent=1 // pred_fallthru
      _
    // Predicated region
    $region14: #{tpu_custom_call.1} parent=1 // pred_check
      _
    $region15: #{tpu_custom_call.1} parent=1 // pred_check_branch
      %31 = sbr.rel (0) target = $region17
    $region16: #{tpu_custom_call.1} parent=1 // pred_region
      _
    $region17: #{tpu_custom_call.1} parent=1 // pred_fallthru
      _
    // Predicated region
    $region18: #{tpu_custom_call.1} parent=1 // pred_check
      _
    $region19: #{tpu_custom_call.1} parent=1 // pred_check_branch
      %33 = sbr.rel (0) target = $region21
    $region20: #{tpu_custom_call.1} parent=1 // pred_region
      _
    $region21: #{tpu_custom_call.1} parent=1 // pred_fallthru
      _
    // Predicated region
    $region22: #{tpu_custom_call.1} parent=1 // pred_check
      _
    $region23: #{tpu_custom_call.1} parent=1 // pred_check_branch
      %35 = sbr.rel (0) target = $region25
    $region24: #{tpu_custom_call.1} parent=1 // pred_region
      _
    $region25: #{tpu_custom_call.1} parent=1 // pred_fallthru
      _
    // Predicated region
    $region26: #{tpu_custom_call.1} parent=1 // pred_check
      _
    $region27: #{tpu_custom_call.1} parent=1 // pred_check_branch
      %37 = sbr.rel (0) target = $region29
    $region28: #{tpu_custom_call.1} parent=1 // pred_region
      _
    $region29: #{tpu_custom_call.1} parent=1 // pred_fallthru
      _
    // Predicated region
    $region30: #{tpu_custom_call.1} parent=1 // pred_check
      _
    $region31: #{tpu_custom_call.1} parent=1 // pred_check_branch
      %39 = sbr.rel (0) target = $region33
    $region32: #{tpu_custom_call.1} parent=1 // pred_region
      _
    $region33: #{tpu_custom_call.1} parent=1 // pred_fallthru
      _
    // Predicated region
    $region34: #{tpu_custom_call.1} parent=1 // pred_check
      _
    $region35: #{tpu_custom_call.1} parent=1 // pred_check_branch
      %41 = sbr.rel (0) target = $region37
    $region36: #{tpu_custom_call.1} parent=1 // pred_region
      _
    $region37: #{tpu_custom_call.1} parent=1 // pred_fallthru
      _
    // Predicated region
    $region38: #{tpu_custom_call.1} parent=1 // pred_check
      _
    $region39: #{tpu_custom_call.1} parent=1 // pred_check_branch
      %43 = sbr.rel (0) target = $region41
    $region40: #{tpu_custom_call.1} parent=1 // pred_region
      _
    $region41: #{tpu_custom_call.1} parent=1 // pred_fallthru
      _
    // Predicated region
    $region42: #{tpu_custom_call.1} parent=1 // pred_check
      _
    $region43: #{tpu_custom_call.1} parent=1 // pred_check_branch
      %45 = sbr.rel (0) target = $region45
    $region44: #{tpu_custom_call.1} parent=1 // pred_region
      _
    $region45: #{tpu_custom_call.1} parent=1 // pred_fallthru
      _
    // Predicated region
    $region46: #{tpu_custom_call.1} parent=1 // pred_check
      _
    $region47: #{tpu_custom_call.1} parent=1 // pred_check_branch
      %47 = sbr.rel (0) target = $region49
    $region48: #{tpu_custom_call.1} parent=1 // pred_region
      _
    $region49: #{tpu_custom_call.1} parent=1 // pred_fallthru
      _
    // Predicated region
    $region50: #{tpu_custom_call.1} parent=1 // pred_check
      _
    $region51: #{tpu_custom_call.1} parent=1 // pred_check_branch
      %49 = sbr.rel (0) target = $region53
    $region52: #{tpu_custom_call.1} parent=1 // pred_region
      _
    $region53: #{tpu_custom_call.1} parent=1 // pred_fallthru
      _
    // Predicated region
    $region54: #{tpu_custom_call.1} parent=1 // pred_check
      _
    $region55: #{tpu_custom_call.1} parent=1 // pred_check_branch
      %51 = sbr.rel (0) target = $region57
    $region56: #{tpu_custom_call.1} parent=1 // pred_region
      _
    $region57: #{tpu_custom_call.1} parent=1 // pred_fallthru
      _
    // Predicated region
    $region58: #{tpu_custom_call.1} parent=1 // pred_check
      _
    $region59: #{tpu_custom_call.1} parent=1 // pred_check_branch
      %53 = sbr.rel (0) target = $region61
    $region60: #{tpu_custom_call.1} parent=1 // pred_region
      _
    $region61: #{tpu_custom_call.1} parent=1 // pred_fallthru
      _
    // Predicated region
    $region62: #{tpu_custom_call.1} parent=1 // pred_check
      _
    $region63: #{tpu_custom_call.1} parent=1 // pred_check_branch
      %55 = sbr.rel (0) target = $region65
    $region64: #{tpu_custom_call.1} parent=1 // pred_region
      _
    $region65: #{tpu_custom_call.1} parent=1 // pred_fallthru
      _
    // Predicated region
    $region66: #{tpu_custom_call.1} parent=1 // pred_check
      _
    $region67: #{tpu_custom_call.1} parent=1 // pred_check_branch
      %57 = sbr.rel (0) target = $region69
    $region68: #{tpu_custom_call.1} parent=1 // pred_region
      _
    $region69: #{tpu_custom_call.1} parent=1 // pred_fallthru
      _
    // Predicated region
    $region70: #{tpu_custom_call.1} parent=1 // pred_check
      _
    $region71: #{tpu_custom_call.1} parent=1 // pred_check_branch
      %59 = sbr.rel (0) target = $region73
    $region72: #{tpu_custom_call.1} parent=1 // pred_region
      _
    $region73: #{tpu_custom_call.1} parent=1 // pred_fallthru
      _
    %v61 = vld [vmem:[%s1] sm:$0x1]
    %vm62 = vcmp.ge.s32.totalorder %v61, 1
    %vm63 = vcmp.ge.s32.totalorder %v61, 2
    %vm64 = vcmp.ge.s32.totalorder %v61, 4
    %vm65 = vcmp.lt.s32.totalorder %v61, 63
    %vm66 = vcmp.lt.s32.totalorder %v61, 62
    %vm67 = vcmp.lt.s32.totalorder %v61, 60
    %v68 = vld [vmem:[%s0] sm:$0xff]
    %v69 = vld [vmem:[%s0 + $0x8] sm:$0xf]
    %v70 = vld [vmem:[%s2] sm:$0xf]
    %v71 = vld [vmem:[%s2 + $0x4] sm:$0xf]
    %v72 = vld [vmem:[%s2 + $0x8] sm:$0xf]
    %v73 = vld [vmem:[%s2 + $0xc] sm:$0xf]
    %v74 = vpack.c.bf16 %v69, %v68
    %v75 = vld [vmem:[%s3] sm:$0xff]
    %v76 = vld [vmem:[%s3 + $0x8] sm:$0xff]
    %v77 = vld [vmem:[%s3 + $0x10] sm:$0xff]
    %v78 = vld [vmem:[%s3 + $0x18] sm:$0xff]
    %80 = vset.pattern.permute.xlu0 0
    %81 = vperm.xlu0 %80, %v75
    %v82 = vpop.permute.xlu0 %81
    %85 = vset.pattern.permute.xlu0 0
    %86 = vperm.xlu0 %85, %v76
    %v87 = vpop.permute.xlu0 %86
    %90 = vset.pattern.permute.xlu0 0
    %91 = vperm.xlu0 %90, %v77
    %v92 = vpop.permute.xlu0 %91
    %95 = vset.pattern.permute.xlu0 0
    %96 = vperm.xlu0 %95, %v78
    %v97 = vpop.permute.xlu0 %96
    %v103 = vunpack.c.l.b16 %v70
    %v104 = vunpack.c.l.b16 %v71
    %v105 = vunpack.c.l.b16 %v72
    %v106 = vunpack.c.l.b16 %v73
    %v107 = vpack.c.b16 %v104, %v103
    %v108 = vpack.c.b16 %v106, %v105
    %vm109 = vcmask 97280
    %v111 = vsel %vm109, %v107, 0
    %v114 = vsel %vm109, %v108, 0
    %vm116 = vcmask 1045504
    %v118 = vsel %vm116, %v74, 0
    %120 = vmatprep.subr.bf16.mxu0 0
    %121 = vmatpush1.bf16.msra.mxu0 0
    %122 = vmatprep.subr.bf16.mxu0 0
    %123 = vmatpush1.bf16.msra.mxu0 0
    %124 = vmatprep.subr.bf16.mxu0 0
    %125 = vmatpush1.bf16.msra.mxu0 0
    %126 = vmatprep.subr.bf16.mxu0 0
    %127 = vmatpush1.bf16.msra.mxu0 0
    %128 = vmatprep.subr.bf16.mxu0 0
    %129 = vmatpush1.bf16.msra.mxu0 0
    %130 = vmatprep.subr.bf16.mxu0 0
    %131 = vmatpush1.bf16.msra.mxu0 0
    %132 = vmatprep.subr.bf16.mxu0 0
    %133 = vmatpush1.bf16.msra.mxu0 0
    %134 = vmatprep.subr.bf16.mxu0 0
    %135 = vmatpush1.bf16.msra.mxu0 %v118
    %136 = vmatprep.subr.bf16.mxu0 0
    %137 = vmatpush2.bf16.msra.mxu0 0
    %138 = vmatprep.subr.bf16.mxu0 0
    %139 = vmatpush2.bf16.msra.mxu0 0
    %140 = vmatprep.subr.bf16.mxu0 0
    %141 = vmatpush2.bf16.msra.mxu0 0
    %142 = vmatprep.subr.bf16.mxu0 0
    %143 = vmatpush2.bf16.msra.mxu0 0
    %144 = vmatprep.subr.bf16.mxu0 0
    %145 = vmatpush2.bf16.msra.mxu0 0
    %146 = vmatprep.subr.bf16.mxu0 0
    %147 = vmatpush2.bf16.msra.mxu0 0
    %148 = vmatprep.subr.bf16.mxu0 0
    %149 = vmatpush2.bf16.msra.mxu0 0
    %150 = vmatprep.subr.bf16.mxu0 0
    %151 = vmatpush2.bf16.msra.mxu0 0
    %152 = vmatprep.mubr.bf16.mxu0 0
    %153 = vmatmul.mubr.bf16.gmra.mxu0 %v111
    %v154 = vpop.f32.mrf.mxu0
    %v155 = vadd.f32 %v82, %v154
    %v156 = vpop.f32.mrf.mxu0
    %v157 = vpop.f32.mrf.mxu0
    %v158 = vadd.f32 %v87, %v157
    %v159 = vpop.f32.mrf.mxu0
    %160 = vmatprep.mubr.bf16.mxu0 0
    %161 = vmatmul.mubr.bf16.gmra.mxu0 %v114
    %v162 = vpop.f32.mrf.mxu0
    %v163 = vadd.f32 %v92, %v162
    %v164 = vpop.f32.mrf.mxu0
    %v165 = vpop.f32.mrf.mxu0
    %v166 = vadd.f32 %v97, %v165
    %v167 = vpop.f32.mrf.mxu0
    %168 = vdwg.mxu0
    %169 = vrot.lane.b32.xlu0 %v155, 1
    %v170 = vpop.permute.xlu0 %169
    %171 = vrot.lane.b32.xlu0 %v158, 1
    %v172 = vpop.permute.xlu0 %171
    %173 = vrot.lane.b32.xlu0 %v163, 1
    %v174 = vpop.permute.xlu0 %173
    %175 = vrot.lane.b32.xlu0 %v166, 1
    %v176 = vpop.permute.xlu0 %175
    %v177 = vsel %vm62, 1, 0
    %v178 = vlaneseq
    %v179 = vshrl.u32 %v178, 7
    %v180 = vsub.s32 0, %v179
    %v181 = vrot.slane %v177, %v180
    %vm182 = vcmp.eq.s32.totalorder %v181, 1
    %v183 = vsel %vm182, %v170, 0.0
    %v184 = vsel %vm182, %v172, 0.0
    %v185 = vsel %vm182, %v174, 0.0
    %v186 = vsel %vm182, %v176, 0.0
    %187 = vrot.lane.b32.xlu0 %v155, 127
    %v188 = vpop.permute.xlu0 %187
    %189 = vrot.lane.b32.xlu0 %v158, 127
    %v190 = vpop.permute.xlu0 %189
    %191 = vrot.lane.b32.xlu0 %v163, 127
    %v192 = vpop.permute.xlu0 %191
    %193 = vrot.lane.b32.xlu0 %v166, 127
    %v194 = vpop.permute.xlu0 %193
    %v195 = vsel %vm65, 1, 0
    %v196 = vlaneseq
    %v197 = vshrl.u32 %v196, 7
    %v198 = vsub.s32 0, %v197
    %v199 = vrot.slane %v195, %v198
    %vm200 = vcmp.eq.s32.totalorder %v199, 1
    %v201 = vsel %vm200, %v188, 0.0
    %v202 = vsel %vm200, %v190, 0.0
    %v203 = vsel %vm200, %v192, 0.0
    %v204 = vsel %vm200, %v194, 0.0
    %v205 = vld [vmem:[%s4] sm:$0xf]
    %v206 = vld [vmem:[%s4 + $0x4] sm:$0xf]
    %v207 = vld [vmem:[%s4 + $0x8] sm:$0xf]
    %v208 = vld [vmem:[%s4 + $0xc] sm:$0xf]
    %v209 = vpack.c.bf16 %v184, %v183
    %v210 = vpack.c.bf16 %v186, %v185
    %v211 = vpack.c.bf16 %v158, %v155
    %v212 = vpack.c.bf16 %v166, %v163
    %v213 = vpack.c.bf16 %v202, %v201
    %v214 = vpack.c.bf16 %v204, %v203
    %v215 = vld [vmem:[%s5] sm:$0xff]
    %v216 = vld [vmem:[%s5 + $0x8] sm:$0xff]
    %v217 = vld [vmem:[%s5 + $0x10] sm:$0xff]
    %v218 = vld [vmem:[%s5 + $0x18] sm:$0xff]
    %220 = vset.pattern.permute.xlu0 0
    %221 = vperm.xlu0 %220, %v215
    %v222 = vpop.permute.xlu0 %221
    %225 = vset.pattern.permute.xlu0 0
    %226 = vperm.xlu0 %225, %v216
    %v227 = vpop.permute.xlu0 %226
    %230 = vset.pattern.permute.xlu0 0
    %231 = vperm.xlu0 %230, %v217
    %v232 = vpop.permute.xlu0 %231
    %235 = vset.pattern.permute.xlu0 0
    %236 = vperm.xlu0 %235, %v218
    %v237 = vpop.permute.xlu0 %236
    %v243 = vunpack.c.l.b16 %v205
    %v244 = vunpack.c.l.b16 %v206
    %v245 = vunpack.c.l.b16 %v207
    %v246 = vunpack.c.l.b16 %v208
    %v247 = vpack.c.b16 %v244, %v243
    %v248 = vpack.c.b16 %v246, %v245
    %vm249 = vcmask 785408
    %v251 = vsel %vm249, %v247, 0
    %v254 = vsel %vm249, %v248, 0
    %256 = vmatprep.subr.bf16.mxu0 0
    %257 = vmatpush1.bf16.msra.mxu0 0
    %258 = vmatprep.subr.bf16.mxu0 0
    %259 = vmatpush1.bf16.msra.mxu0 0
    %260 = vmatprep.subr.bf16.mxu0 0
    %261 = vmatpush1.bf16.msra.mxu0 %v214
    %262 = vmatprep.subr.bf16.mxu0 0
    %263 = vmatpush1.bf16.msra.mxu0 %v213
    %264 = vmatprep.subr.bf16.mxu0 0
    %265 = vmatpush1.bf16.msra.mxu0 %v212
    %266 = vmatprep.subr.bf16.mxu0 0
    %267 = vmatpush1.bf16.msra.mxu0 %v211
    %268 = vmatprep.subr.bf16.mxu0 0
    %269 = vmatpush1.bf16.msra.mxu0 %v210
    %270 = vmatprep.subr.bf16.mxu0 0
    %271 = vmatpush1.bf16.msra.mxu0 %v209
    %272 = vmatprep.subr.bf16.mxu0 0
    %273 = vmatpush2.bf16.msra.mxu0 0
    %274 = vmatprep.subr.bf16.mxu0 0
    %275 = vmatpush2.bf16.msra.mxu0 0
    %276 = vmatprep.subr.bf16.mxu0 0
    %277 = vmatpush2.bf16.msra.mxu0 0
    %278 = vmatprep.subr.bf16.mxu0 0
    %279 = vmatpush2.bf16.msra.mxu0 0
    %280 = vmatprep.subr.bf16.mxu0 0
    %281 = vmatpush2.bf16.msra.mxu0 0
    %282 = vmatprep.subr.bf16.mxu0 0
    %283 = vmatpush2.bf16.msra.mxu0 0
    %284 = vmatprep.subr.bf16.mxu0 0
    %285 = vmatpush2.bf16.msra.mxu0 0
    %286 = vmatprep.subr.bf16.mxu0 0
    %287 = vmatpush2.bf16.msra.mxu0 0
    %288 = vmatprep.mubr.bf16.mxu0 0
    %289 = vmatmul.mubr.bf16.gmra.mxu0 %v251
    %v290 = vpop.f32.mrf.mxu0
    %v291 = vadd.f32 %v222, %v290
    %v292 = vpop.f32.mrf.mxu0
    %v293 = vpop.f32.mrf.mxu0
    %v294 = vadd.f32 %v227, %v293
    %v295 = vpop.f32.mrf.mxu0
    %296 = vmatprep.mubr.bf16.mxu0 0
    %297 = vmatmul.mubr.bf16.gmra.mxu0 %v254
    %v298 = vpop.f32.mrf.mxu0
    %v299 = vadd.f32 %v232, %v298
    %v300 = vpop.f32.mrf.mxu0
    %v301 = vpop.f32.mrf.mxu0
    %v302 = vadd.f32 %v237, %v301
    %v303 = vpop.f32.mrf.mxu0
    %304 = vdwg.mxu0
    %v305 = vmax.f32 %v291, 0.0
    %v306 = vmax.f32 %v294, 0.0
    %v307 = vmax.f32 %v299, 0.0
    %v308 = vmax.f32 %v302, 0.0
    %v309 = vld [vmem:[%s6] sm:$0xf]
    %v310 = vld [vmem:[%s6 + $0x4] sm:$0xf]
    %v311 = vld [vmem:[%s6 + $0x8] sm:$0xf]
    %v312 = vld [vmem:[%s6 + $0xc] sm:$0xf]
    %v313 = vpack.c.bf16 %v306, %v305
    %v314 = vpack.c.bf16 %v308, %v307
    %v319 = vunpack.c.l.b16 %v309
    %v320 = vunpack.c.l.b16 %v310
    %v321 = vunpack.c.l.b16 %v311
    %v322 = vunpack.c.l.b16 %v312
    %v323 = vpack.c.b16 %v320, %v319
    %v324 = vpack.c.b16 %v322, %v321
    %vm325 = vcmask 261120
    %v327 = vsel %vm325, %v323, 0
    %v330 = vsel %vm325, %v324, 0
    %332 = vmatprep.subr.bf16.mxu0 0
    %333 = vmatpush1.bf16.msra.mxu0 0
    %334 = vmatprep.subr.bf16.mxu0 0
    %335 = vmatpush1.bf16.msra.mxu0 0
    %336 = vmatprep.subr.bf16.mxu0 0
    %337 = vmatpush1.bf16.msra.mxu0 0
    %338 = vmatprep.subr.bf16.mxu0 0
    %339 = vmatpush1.bf16.msra.mxu0 0
    %340 = vmatprep.subr.bf16.mxu0 0
    %341 = vmatpush1.bf16.msra.mxu0 0
    %342 = vmatprep.subr.bf16.mxu0 0
    %343 = vmatpush1.bf16.msra.mxu0 0
    %344 = vmatprep.subr.bf16.mxu0 0
    %345 = vmatpush1.bf16.msra.mxu0 %v314
    %346 = vmatprep.subr.bf16.mxu0 0
    %347 = vmatpush1.bf16.msra.mxu0 %v313
    %348 = vmatprep.subr.bf16.mxu0 0
    %349 = vmatpush2.bf16.msra.mxu0 0
    %350 = vmatprep.subr.bf16.mxu0 0
    %351 = vmatpush2.bf16.msra.mxu0 0
    %352 = vmatprep.subr.bf16.mxu0 0
    %353 = vmatpush2.bf16.msra.mxu0 0
    %354 = vmatprep.subr.bf16.mxu0 0
    %355 = vmatpush2.bf16.msra.mxu0 0
    %356 = vmatprep.subr.bf16.mxu0 0
    %357 = vmatpush2.bf16.msra.mxu0 0
    %358 = vmatprep.subr.bf16.mxu0 0
    %359 = vmatpush2.bf16.msra.mxu0 0
    %360 = vmatprep.subr.bf16.mxu0 0
    %361 = vmatpush2.bf16.msra.mxu0 0
    %362 = vmatprep.subr.bf16.mxu0 0
    %363 = vmatpush2.bf16.msra.mxu0 0
    %364 = vmatprep.mubr.bf16.mxu0 0
    %365 = vmatmul.mubr.bf16.gmra.mxu0 %v327
    %v366 = vpop.f32.mrf.mxu0
    %v367 = vadd.f32 0.0, %v366
    %v368 = vpop.f32.mrf.mxu0
    %v369 = vpop.f32.mrf.mxu0
    %v370 = vadd.f32 0.0, %v369
    %v371 = vpop.f32.mrf.mxu0
    %372 = vmatprep.mubr.bf16.mxu0 0
    %373 = vmatmul.mubr.bf16.gmra.mxu0 %v330
    %v374 = vpop.f32.mrf.mxu0
    %v375 = vadd.f32 0.0, %v374
    %v376 = vpop.f32.mrf.mxu0
    %v377 = vpop.f32.mrf.mxu0
    %v378 = vadd.f32 0.0, %v377
    %v379 = vpop.f32.mrf.mxu0
    %380 = vdwg.mxu0
    %v381 = vadd.f32 %v155, %v367
    %v382 = vadd.f32 %v158, %v370
    %v383 = vadd.f32 %v163, %v375
    %v384 = vadd.f32 %v166, %v378
    %v385 = vld [vmem:[%s7] sm:$0xff]
    %v386 = vld [vmem:[%s7 + $0x8] sm:$0xff]
    %v387 = vld [vmem:[%s7 + $0x10] sm:$0xff]
    %v388 = vld [vmem:[%s7 + $0x18] sm:$0xff]
    %390 = vset.pattern.permute.xlu0 0
    %391 = vperm.xlu0 %390, %v385
    %v392 = vpop.permute.xlu0 %391
    %395 = vset.pattern.permute.xlu0 0
    %396 = vperm.xlu0 %395, %v386
    %v397 = vpop.permute.xlu0 %396
    %400 = vset.pattern.permute.xlu0 0
    %401 = vperm.xlu0 %400, %v387
    %v402 = vpop.permute.xlu0 %401
    %405 = vset.pattern.permute.xlu0 0
    %406 = vperm.xlu0 %405, %v388
    %v407 = vpop.permute.xlu0 %406
    %v409 = vadd.f32 %v381, %v392
    %v410 = vadd.f32 %v382, %v397
    %v411 = vadd.f32 %v383, %v402
    %v412 = vadd.f32 %v384, %v407
    %413 = vrot.lane.b32.xlu0 %v409, 2
    %v414 = vpop.permute.xlu0 %413
    %415 = vrot.lane.b32.xlu0 %v410, 2
    %v416 = vpop.permute.xlu0 %415
    %417 = vrot.lane.b32.xlu0 %v411, 2
    %v418 = vpop.permute.xlu0 %417
    %419 = vrot.lane.b32.xlu0 %v412, 2
    %v420 = vpop.permute.xlu0 %419
    %v421 = vsel %vm63, 1, 0
    %v422 = vlaneseq
    %v423 = vshrl.u32 %v422, 7
    %v424 = vsub.s32 0, %v423
    %v425 = vrot.slane %v421, %v424
    %vm426 = vcmp.eq.s32.totalorder %v425, 1
    %v427 = vsel %vm426, %v414, 0.0
    %v428 = vsel %vm426, %v416, 0.0
    %v429 = vsel %vm426, %v418, 0.0
    %v430 = vsel %vm426, %v420, 0.0
    %431 = vrot.lane.b32.xlu0 %v409, 126
    %v432 = vpop.permute.xlu0 %431
    %433 = vrot.lane.b32.xlu0 %v410, 126
    %v434 = vpop.permute.xlu0 %433
    %435 = vrot.lane.b32.xlu0 %v411, 126
    %v436 = vpop.permute.xlu0 %435
    %437 = vrot.lane.b32.xlu0 %v412, 126
    %v438 = vpop.permute.xlu0 %437
    %v439 = vsel %vm66, 1, 0
    %v440 = vlaneseq
    %v441 = vshrl.u32 %v440, 7
    %v442 = vsub.s32 0, %v441
    %v443 = vrot.slane %v439, %v442
    %vm444 = vcmp.eq.s32.totalorder %v443, 1
    %v445 = vsel %vm444, %v432, 0.0
    %v446 = vsel %vm444, %v434, 0.0
    %v447 = vsel %vm444, %v436, 0.0
    %v448 = vsel %vm444, %v438, 0.0
    %s449 = scalar_lea.vmem %s4, 16
    %v450 = vld [vmem:[%s449] sm:$0xf]
    %v451 = vld [vmem:[%s449 + $0x4] sm:$0xf]
    %v452 = vld [vmem:[%s449 + $0x8] sm:$0xf]
    %v453 = vld [vmem:[%s449 + $0xc] sm:$0xf]
    %v454 = vpack.c.bf16 %v428, %v427
    %v455 = vpack.c.bf16 %v430, %v429
    %v456 = vpack.c.bf16 %v410, %v409
    %v457 = vpack.c.bf16 %v412, %v411
    %v458 = vpack.c.bf16 %v446, %v445
    %v459 = vpack.c.bf16 %v448, %v447
    %s460 = scalar_lea.vmem %s5, 32
    %v461 = vld [vmem:[%s460] sm:$0xff]
    %v462 = vld [vmem:[%s460 + $0x8] sm:$0xff]
    %v463 = vld [vmem:[%s460 + $0x10] sm:$0xff]
    %v464 = vld [vmem:[%s460 + $0x18] sm:$0xff]
    %466 = vset.pattern.permute.xlu0 0
    %467 = vperm.xlu0 %466, %v461
    %v468 = vpop.permute.xlu0 %467
    %471 = vset.pattern.permute.xlu0 0
    %472 = vperm.xlu0 %471, %v462
    %v473 = vpop.permute.xlu0 %472
    %476 = vset.pattern.permute.xlu0 0
    %477 = vperm.xlu0 %476, %v463
    %v478 = vpop.permute.xlu0 %477
    %481 = vset.pattern.permute.xlu0 0
    %482 = vperm.xlu0 %481, %v464
    %v483 = vpop.permute.xlu0 %482
    %v489 = vunpack.c.l.b16 %v450
    %v490 = vunpack.c.l.b16 %v451
    %v491 = vunpack.c.l.b16 %v452
    %v492 = vunpack.c.l.b16 %v453
    %v493 = vpack.c.b16 %v490, %v489
    %v494 = vpack.c.b16 %v492, %v491
    %v496 = vsel %vm249, %v493, 0
    %v499 = vsel %vm249, %v494, 0
    %501 = vmatprep.subr.bf16.mxu0 0
    %502 = vmatpush1.bf16.msra.mxu0 0
    %503 = vmatprep.subr.bf16.mxu0 0
    %504 = vmatpush1.bf16.msra.mxu0 0
    %505 = vmatprep.subr.bf16.mxu0 0
    %506 = vmatpush1.bf16.msra.mxu0 %v459
    %507 = vmatprep.subr.bf16.mxu0 0
    %508 = vmatpush1.bf16.msra.mxu0 %v458
    %509 = vmatprep.subr.bf16.mxu0 0
    %510 = vmatpush1.bf16.msra.mxu0 %v457
    %511 = vmatprep.subr.bf16.mxu0 0
    %512 = vmatpush1.bf16.msra.mxu0 %v456
    %513 = vmatprep.subr.bf16.mxu0 0
    %514 = vmatpush1.bf16.msra.mxu0 %v455
    %515 = vmatprep.subr.bf16.mxu0 0
    %516 = vmatpush1.bf16.msra.mxu0 %v454
    %517 = vmatprep.subr.bf16.mxu0 0
    %518 = vmatpush2.bf16.msra.mxu0 0
    %519 = vmatprep.subr.bf16.mxu0 0
    %520 = vmatpush2.bf16.msra.mxu0 0
    %521 = vmatprep.subr.bf16.mxu0 0
    %522 = vmatpush2.bf16.msra.mxu0 0
    %523 = vmatprep.subr.bf16.mxu0 0
    %524 = vmatpush2.bf16.msra.mxu0 0
    %525 = vmatprep.subr.bf16.mxu0 0
    %526 = vmatpush2.bf16.msra.mxu0 0
    %527 = vmatprep.subr.bf16.mxu0 0
    %528 = vmatpush2.bf16.msra.mxu0 0
    %529 = vmatprep.subr.bf16.mxu0 0
    %530 = vmatpush2.bf16.msra.mxu0 0
    %531 = vmatprep.subr.bf16.mxu0 0
    %532 = vmatpush2.bf16.msra.mxu0 0
    %533 = vmatprep.mubr.bf16.mxu0 0
    %534 = vmatmul.mubr.bf16.gmra.mxu0 %v496
    %v535 = vpop.f32.mrf.mxu0
    %v536 = vadd.f32 %v468, %v535
    %v537 = vpop.f32.mrf.mxu0
    %v538 = vpop.f32.mrf.mxu0
    %v539 = vadd.f32 %v473, %v538
    %v540 = vpop.f32.mrf.mxu0
    %541 = vmatprep.mubr.bf16.mxu0 0
    %542 = vmatmul.mubr.bf16.gmra.mxu0 %v499
    %v543 = vpop.f32.mrf.mxu0
    %v544 = vadd.f32 %v478, %v543
    %v545 = vpop.f32.mrf.mxu0
    %v546 = vpop.f32.mrf.mxu0
    %v547 = vadd.f32 %v483, %v546
    %v548 = vpop.f32.mrf.mxu0
    %549 = vdwg.mxu0
    %v550 = vmax.f32 %v536, 0.0
    %v551 = vmax.f32 %v539, 0.0
    %v552 = vmax.f32 %v544, 0.0
    %v553 = vmax.f32 %v547, 0.0
    %s554 = scalar_lea.vmem %s6, 16
    %v555 = vld [vmem:[%s554] sm:$0xf]
    %v556 = vld [vmem:[%s554 + $0x4] sm:$0xf]
    %v557 = vld [vmem:[%s554 + $0x8] sm:$0xf]
    %v558 = vld [vmem:[%s554 + $0xc] sm:$0xf]
    %v559 = vpack.c.bf16 %v551, %v550
    %v560 = vpack.c.bf16 %v553, %v552
    %v565 = vunpack.c.l.b16 %v555
    %v566 = vunpack.c.l.b16 %v556
    %v567 = vunpack.c.l.b16 %v557
    %v568 = vunpack.c.l.b16 %v558
    %v569 = vpack.c.b16 %v566, %v565
    %v570 = vpack.c.b16 %v568, %v567
    %v572 = vsel %vm325, %v569, 0
    %v575 = vsel %vm325, %v570, 0
    %577 = vmatprep.subr.bf16.mxu0 0
    %578 = vmatpush1.bf16.msra.mxu0 0
    %579 = vmatprep.subr.bf16.mxu0 0
    %580 = vmatpush1.bf16.msra.mxu0 0
    %581 = vmatprep.subr.bf16.mxu0 0
    %582 = vmatpush1.bf16.msra.mxu0 0
    %583 = vmatprep.subr.bf16.mxu0 0
    %584 = vmatpush1.bf16.msra.mxu0 0
    %585 = vmatprep.subr.bf16.mxu0 0
    %586 = vmatpush1.bf16.msra.mxu0 0
    %587 = vmatprep.subr.bf16.mxu0 0
    %588 = vmatpush1.bf16.msra.mxu0 0
    %589 = vmatprep.subr.bf16.mxu0 0
    %590 = vmatpush1.bf16.msra.mxu0 %v560
    %591 = vmatprep.subr.bf16.mxu0 0
    %592 = vmatpush1.bf16.msra.mxu0 %v559
    %593 = vmatprep.subr.bf16.mxu0 0
    %594 = vmatpush2.bf16.msra.mxu0 0
    %595 = vmatprep.subr.bf16.mxu0 0
    %596 = vmatpush2.bf16.msra.mxu0 0
    %597 = vmatprep.subr.bf16.mxu0 0
    %598 = vmatpush2.bf16.msra.mxu0 0
    %599 = vmatprep.subr.bf16.mxu0 0
    %600 = vmatpush2.bf16.msra.mxu0 0
    %601 = vmatprep.subr.bf16.mxu0 0
    %602 = vmatpush2.bf16.msra.mxu0 0
    %603 = vmatprep.subr.bf16.mxu0 0
    %604 = vmatpush2.bf16.msra.mxu0 0
    %605 = vmatprep.subr.bf16.mxu0 0
    %606 = vmatpush2.bf16.msra.mxu0 0
    %607 = vmatprep.subr.bf16.mxu0 0
    %608 = vmatpush2.bf16.msra.mxu0 0
    %609 = vmatprep.mubr.bf16.mxu0 0
    %610 = vmatmul.mubr.bf16.gmra.mxu0 %v572
    %v611 = vpop.f32.mrf.mxu0
    %v612 = vadd.f32 0.0, %v611
    %v613 = vpop.f32.mrf.mxu0
    %v614 = vpop.f32.mrf.mxu0
    %v615 = vadd.f32 0.0, %v614
    %v616 = vpop.f32.mrf.mxu0
    %617 = vmatprep.mubr.bf16.mxu0 0
    %618 = vmatmul.mubr.bf16.gmra.mxu0 %v575
    %v619 = vpop.f32.mrf.mxu0
    %v620 = vadd.f32 0.0, %v619
    %v621 = vpop.f32.mrf.mxu0
    %v622 = vpop.f32.mrf.mxu0
    %v623 = vadd.f32 0.0, %v622
    %v624 = vpop.f32.mrf.mxu0
    %625 = vdwg.mxu0
    %v626 = vadd.f32 %v409, %v612
    %v627 = vadd.f32 %v410, %v615
    %v628 = vadd.f32 %v411, %v620
    %v629 = vadd.f32 %v412, %v623
    %s630 = scalar_lea.vmem %s7, 32
    %v631 = vld [vmem:[%s630] sm:$0xff]
    %v632 = vld [vmem:[%s630 + $0x8] sm:$0xff]
    %v633 = vld [vmem:[%s630 + $0x10] sm:$0xff]
    %v634 = vld [vmem:[%s630 + $0x18] sm:$0xff]
    %636 = vset.pattern.permute.xlu0 0
    %637 = vperm.xlu0 %636, %v631
    %v638 = vpop.permute.xlu0 %637
    %641 = vset.pattern.permute.xlu0 0
    %642 = vperm.xlu0 %641, %v632
    %v643 = vpop.permute.xlu0 %642
    %646 = vset.pattern.permute.xlu0 0
    %647 = vperm.xlu0 %646, %v633
    %v648 = vpop.permute.xlu0 %647
    %651 = vset.pattern.permute.xlu0 0
    %652 = vperm.xlu0 %651, %v634
    %v653 = vpop.permute.xlu0 %652
    %v655 = vadd.f32 %v626, %v638
    %v656 = vadd.f32 %v627, %v643
    %v657 = vadd.f32 %v628, %v648
    %v658 = vadd.f32 %v629, %v653
    %659 = vrot.lane.b32.xlu0 %v655, 4
    %v660 = vpop.permute.xlu0 %659
    %661 = vrot.lane.b32.xlu0 %v656, 4
    %v662 = vpop.permute.xlu0 %661
    %663 = vrot.lane.b32.xlu0 %v657, 4
    %v664 = vpop.permute.xlu0 %663
    %665 = vrot.lane.b32.xlu0 %v658, 4
    %v666 = vpop.permute.xlu0 %665
    %v667 = vsel %vm64, 1, 0
    %v668 = vlaneseq
    %v669 = vshrl.u32 %v668, 7
    %v670 = vsub.s32 0, %v669
    %v671 = vrot.slane %v667, %v670
    %vm672 = vcmp.eq.s32.totalorder %v671, 1
    %v673 = vsel %vm672, %v660, 0.0
    %v674 = vsel %vm672, %v662, 0.0
    %v675 = vsel %vm672, %v664, 0.0
    %v676 = vsel %vm672, %v666, 0.0
    %677 = vrot.lane.b32.xlu0 %v655, 124
    %v678 = vpop.permute.xlu0 %677
    %679 = vrot.lane.b32.xlu0 %v656, 124
    %v680 = vpop.permute.xlu0 %679
    %681 = vrot.lane.b32.xlu0 %v657, 124
    %v682 = vpop.permute.xlu0 %681
    %683 = vrot.lane.b32.xlu0 %v658, 124
    %v684 = vpop.permute.xlu0 %683
    %v685 = vsel %vm67, 1, 0
    %v686 = vlaneseq
    %v687 = vshrl.u32 %v686, 7
    %v688 = vsub.s32 0, %v687
    %v689 = vrot.slane %v685, %v688
    %vm690 = vcmp.eq.s32.totalorder %v689, 1
    %v691 = vsel %vm690, %v678, 0.0
    %v692 = vsel %vm690, %v680, 0.0
    %v693 = vsel %vm690, %v682, 0.0
    %v694 = vsel %vm690, %v684, 0.0
    %s695 = scalar_lea.vmem %s4, 32
    %v696 = vld [vmem:[%s695] sm:$0xf]
    %v697 = vld [vmem:[%s695 + $0x4] sm:$0xf]
    %v698 = vld [vmem:[%s695 + $0x8] sm:$0xf]
    %v699 = vld [vmem:[%s695 + $0xc] sm:$0xf]
    %v700 = vpack.c.bf16 %v674, %v673
    %v701 = vpack.c.bf16 %v676, %v675
    %v702 = vpack.c.bf16 %v656, %v655
    %v703 = vpack.c.bf16 %v658, %v657
    %v704 = vpack.c.bf16 %v692, %v691
    %v705 = vpack.c.bf16 %v694, %v693
    %s706 = scalar_lea.vmem %s5, 64
    %v707 = vld [vmem:[%s706] sm:$0xff]
    %v708 = vld [vmem:[%s706 + $0x8] sm:$0xff]
    %v709 = vld [vmem:[%s706 + $0x10] sm:$0xff]
    %v710 = vld [vmem:[%s706 + $0x18] sm:$0xff]
    %712 = vset.pattern.permute.xlu0 0
    %713 = vperm.xlu0 %712, %v707
    %v714 = vpop.permute.xlu0 %713
    %717 = vset.pattern.permute.xlu0 0
    %718 = vperm.xlu0 %717, %v708
    %v719 = vpop.permute.xlu0 %718
    %722 = vset.pattern.permute.xlu0 0
    %723 = vperm.xlu0 %722, %v709
    %v724 = vpop.permute.xlu0 %723
    %727 = vset.pattern.permute.xlu0 0
    %728 = vperm.xlu0 %727, %v710
    %v729 = vpop.permute.xlu0 %728
    %v735 = vunpack.c.l.b16 %v696
    %v736 = vunpack.c.l.b16 %v697
    %v737 = vunpack.c.l.b16 %v698
    %v738 = vunpack.c.l.b16 %v699
    %v739 = vpack.c.b16 %v736, %v735
    %v740 = vpack.c.b16 %v738, %v737
    %v742 = vsel %vm249, %v739, 0
    %v745 = vsel %vm249, %v740, 0
    %747 = vmatprep.subr.bf16.mxu0 0
    %748 = vmatpush1.bf16.msra.mxu0 0
    %749 = vmatprep.subr.bf16.mxu0 0
    %750 = vmatpush1.bf16.msra.mxu0 0
    %751 = vmatprep.subr.bf16.mxu0 0
    %752 = vmatpush1.bf16.msra.mxu0 %v705
    %753 = vmatprep.subr.bf16.mxu0 0
    %754 = vmatpush1.bf16.msra.mxu0 %v704
    %755 = vmatprep.subr.bf16.mxu0 0
    %756 = vmatpush1.bf16.msra.mxu0 %v703
    %757 = vmatprep.subr.bf16.mxu0 0
    %758 = vmatpush1.bf16.msra.mxu0 %v702
    %759 = vmatprep.subr.bf16.mxu0 0
    %760 = vmatpush1.bf16.msra.mxu0 %v701
    %761 = vmatprep.subr.bf16.mxu0 0
    %762 = vmatpush1.bf16.msra.mxu0 %v700
    %763 = vmatprep.subr.bf16.mxu0 0
    %764 = vmatpush2.bf16.msra.mxu0 0
    %765 = vmatprep.subr.bf16.mxu0 0
    %766 = vmatpush2.bf16.msra.mxu0 0
    %767 = vmatprep.subr.bf16.mxu0 0
    %768 = vmatpush2.bf16.msra.mxu0 0
    %769 = vmatprep.subr.bf16.mxu0 0
    %770 = vmatpush2.bf16.msra.mxu0 0
    %771 = vmatprep.subr.bf16.mxu0 0
    %772 = vmatpush2.bf16.msra.mxu0 0
    %773 = vmatprep.subr.bf16.mxu0 0
    %774 = vmatpush2.bf16.msra.mxu0 0
    %775 = vmatprep.subr.bf16.mxu0 0
    %776 = vmatpush2.bf16.msra.mxu0 0
    %777 = vmatprep.subr.bf16.mxu0 0
    %778 = vmatpush2.bf16.msra.mxu0 0
    %779 = vmatprep.mubr.bf16.mxu0 0
    %780 = vmatmul.mubr.bf16.gmra.mxu0 %v742
    %v781 = vpop.f32.mrf.mxu0
    %v782 = vadd.f32 %v714, %v781
    %v783 = vpop.f32.mrf.mxu0
    %v784 = vpop.f32.mrf.mxu0
    %v785 = vadd.f32 %v719, %v784
    %v786 = vpop.f32.mrf.mxu0
    %787 = vmatprep.mubr.bf16.mxu0 0
    %788 = vmatmul.mubr.bf16.gmra.mxu0 %v745
    %v789 = vpop.f32.mrf.mxu0
    %v790 = vadd.f32 %v724, %v789
    %v791 = vpop.f32.mrf.mxu0
    %v792 = vpop.f32.mrf.mxu0
    %v793 = vadd.f32 %v729, %v792
    %v794 = vpop.f32.mrf.mxu0
    %795 = vdwg.mxu0
    %v796 = vmax.f32 %v782, 0.0
    %v797 = vmax.f32 %v785, 0.0
    %v798 = vmax.f32 %v790, 0.0
    %v799 = vmax.f32 %v793, 0.0
    %s800 = scalar_lea.vmem %s6, 32
    %v801 = vld [vmem:[%s800] sm:$0xf]
    %v802 = vld [vmem:[%s800 + $0x4] sm:$0xf]
    %v803 = vld [vmem:[%s800 + $0x8] sm:$0xf]
    %v804 = vld [vmem:[%s800 + $0xc] sm:$0xf]
    %v805 = vpack.c.bf16 %v797, %v796
    %v806 = vpack.c.bf16 %v799, %v798
    %v811 = vunpack.c.l.b16 %v801
    %v812 = vunpack.c.l.b16 %v802
    %v813 = vunpack.c.l.b16 %v803
    %v814 = vunpack.c.l.b16 %v804
    %v815 = vpack.c.b16 %v812, %v811
    %v816 = vpack.c.b16 %v814, %v813
    %v818 = vsel %vm325, %v815, 0
    %v821 = vsel %vm325, %v816, 0
    %823 = vmatprep.subr.bf16.mxu0 0
    %824 = vmatpush1.bf16.msra.mxu0 0
    %825 = vmatprep.subr.bf16.mxu0 0
    %826 = vmatpush1.bf16.msra.mxu0 0
    %827 = vmatprep.subr.bf16.mxu0 0
    %828 = vmatpush1.bf16.msra.mxu0 0
    %829 = vmatprep.subr.bf16.mxu0 0
    %830 = vmatpush1.bf16.msra.mxu0 0
    %831 = vmatprep.subr.bf16.mxu0 0
    %832 = vmatpush1.bf16.msra.mxu0 0
    %833 = vmatprep.subr.bf16.mxu0 0
    %834 = vmatpush1.bf16.msra.mxu0 0
    %835 = vmatprep.subr.bf16.mxu0 0
    %836 = vmatpush1.bf16.msra.mxu0 %v806
    %837 = vmatprep.subr.bf16.mxu0 0
    %838 = vmatpush1.bf16.msra.mxu0 %v805
    %839 = vmatprep.subr.bf16.mxu0 0
    %840 = vmatpush2.bf16.msra.mxu0 0
    %841 = vmatprep.subr.bf16.mxu0 0
    %842 = vmatpush2.bf16.msra.mxu0 0
    %843 = vmatprep.subr.bf16.mxu0 0
    %844 = vmatpush2.bf16.msra.mxu0 0
    %845 = vmatprep.subr.bf16.mxu0 0
    %846 = vmatpush2.bf16.msra.mxu0 0
    %847 = vmatprep.subr.bf16.mxu0 0
    %848 = vmatpush2.bf16.msra.mxu0 0
    %849 = vmatprep.subr.bf16.mxu0 0
    %850 = vmatpush2.bf16.msra.mxu0 0
    %851 = vmatprep.subr.bf16.mxu0 0
    %852 = vmatpush2.bf16.msra.mxu0 0
    %853 = vmatprep.subr.bf16.mxu0 0
    %854 = vmatpush2.bf16.msra.mxu0 0
    %855 = vmatprep.mubr.bf16.mxu0 0
    %856 = vmatmul.mubr.bf16.gmra.mxu0 %v818
    %v857 = vpop.f32.mrf.mxu0
    %v858 = vadd.f32 0.0, %v857
    %v859 = vpop.f32.mrf.mxu0
    %v860 = vpop.f32.mrf.mxu0
    %v861 = vadd.f32 0.0, %v860
    %v862 = vpop.f32.mrf.mxu0
    %863 = vmatprep.mubr.bf16.mxu0 0
    %864 = vmatmul.mubr.bf16.gmra.mxu0 %v821
    %v865 = vpop.f32.mrf.mxu0
    %v866 = vadd.f32 0.0, %v865
    %v867 = vpop.f32.mrf.mxu0
    %v868 = vpop.f32.mrf.mxu0
    %v869 = vadd.f32 0.0, %v868
    %v870 = vpop.f32.mrf.mxu0
    %871 = vdwg.mxu0
    %v872 = vadd.f32 %v655, %v858
    %v873 = vadd.f32 %v656, %v861
    %v874 = vadd.f32 %v657, %v866
    %v875 = vadd.f32 %v658, %v869
    %s876 = scalar_lea.vmem %s7, 64
    %v877 = vld [vmem:[%s876] sm:$0xff]
    %v878 = vld [vmem:[%s876 + $0x8] sm:$0xff]
    %v879 = vld [vmem:[%s876 + $0x10] sm:$0xff]
    %v880 = vld [vmem:[%s876 + $0x18] sm:$0xff]
    %882 = vset.pattern.permute.xlu0 0
    %883 = vperm.xlu0 %882, %v877
    %v884 = vpop.permute.xlu0 %883
    %887 = vset.pattern.permute.xlu0 0
    %888 = vperm.xlu0 %887, %v878
    %v889 = vpop.permute.xlu0 %888
    %892 = vset.pattern.permute.xlu0 0
    %893 = vperm.xlu0 %892, %v879
    %v894 = vpop.permute.xlu0 %893
    %897 = vset.pattern.permute.xlu0 0
    %898 = vperm.xlu0 %897, %v880
    %v899 = vpop.permute.xlu0 %898
    %v901 = vadd.f32 %v872, %v884
    %v902 = vadd.f32 %v873, %v889
    %v903 = vadd.f32 %v874, %v894
    %v904 = vadd.f32 %v875, %v899
    %v905 = vld [vmem:[%s8] sm:$0xf]
    %v906 = vpack.c.bf16 %v902, %v901
    %v907 = vpack.c.bf16 %v904, %v903
    %v908 = vld [vmem:[%s9] sm:$0xff]
    %910 = vset.pattern.permute.xlu0 0
    %911 = vperm.xlu0 %910, %v908
    %v912 = vpop.permute.xlu0 %911
    %v915 = vsel %vm325, %v905, 0
    %917 = vmatprep.subr.bf16.mxu0 0
    %918 = vmatpush1.bf16.msra.mxu0 0
    %919 = vmatprep.subr.bf16.mxu0 0
    %920 = vmatpush1.bf16.msra.mxu0 0
    %921 = vmatprep.subr.bf16.mxu0 0
    %922 = vmatpush1.bf16.msra.mxu0 0
    %923 = vmatprep.subr.bf16.mxu0 0
    %924 = vmatpush1.bf16.msra.mxu0 0
    %925 = vmatprep.subr.bf16.mxu0 0
    %926 = vmatpush1.bf16.msra.mxu0 0
    %927 = vmatprep.subr.bf16.mxu0 0
    %928 = vmatpush1.bf16.msra.mxu0 0
    %929 = vmatprep.subr.bf16.mxu0 0
    %930 = vmatpush1.bf16.msra.mxu0 %v907
    %931 = vmatprep.subr.bf16.mxu0 0
    %932 = vmatpush1.bf16.msra.mxu0 %v906
    %933 = vmatprep.subr.bf16.mxu0 0
    %934 = vmatpush2.bf16.msra.mxu0 0
    %935 = vmatprep.subr.bf16.mxu0 0
    %936 = vmatpush2.bf16.msra.mxu0 0
    %937 = vmatprep.subr.bf16.mxu0 0
    %938 = vmatpush2.bf16.msra.mxu0 0
    %939 = vmatprep.subr.bf16.mxu0 0
    %940 = vmatpush2.bf16.msra.mxu0 0
    %941 = vmatprep.subr.bf16.mxu0 0
    %942 = vmatpush2.bf16.msra.mxu0 0
    %943 = vmatprep.subr.bf16.mxu0 0
    %944 = vmatpush2.bf16.msra.mxu0 0
    %945 = vmatprep.subr.bf16.mxu0 0
    %946 = vmatpush2.bf16.msra.mxu0 0
    %947 = vmatprep.subr.bf16.mxu0 0
    %948 = vmatpush2.bf16.msra.mxu0 0
    %949 = vmatprep.mubr.bf16.mxu0 0
    %950 = vmatmul.mubr.bf16.gmra.mxu0 %v915
    %v951 = vpop.f32.mrf.mxu0
    %v952 = vadd.f32 %v912, %v951
    %v953 = vpop.f32.mrf.mxu0
    %v954 = vpop.f32.mrf.mxu0
    %v955 = vpop.f32.mrf.mxu0
    %956 = vdwg.mxu0
    %957 = vst [vmem:[#allocation2] sm:$0xff] %v952
    %v958 = vld [vmem:[%s10] sm:$0xf]
    %v959 = vld [vmem:[%s10 + $0x4] sm:$0xf]
    %v960 = vld [vmem:[%s10 + $0x8] sm:$0xf]
    %v961 = vld [vmem:[%s10 + $0xc] sm:$0xf]
    %v962 = vpack.c.bf16 %v952, %v952
    %v963 = vld [vmem:[%s11] sm:$0xff]
    %v964 = vld [vmem:[%s11 + $0x8] sm:$0xff]
    %v965 = vld [vmem:[%s11 + $0x10] sm:$0xff]
    %v966 = vld [vmem:[%s11 + $0x18] sm:$0xff]
    %968 = vset.pattern.permute.xlu0 0
    %969 = vperm.xlu0 %968, %v963
    %v970 = vpop.permute.xlu0 %969
    %973 = vset.pattern.permute.xlu0 0
    %974 = vperm.xlu0 %973, %v964
    %v975 = vpop.permute.xlu0 %974
    %978 = vset.pattern.permute.xlu0 0
    %979 = vperm.xlu0 %978, %v965
    %v980 = vpop.permute.xlu0 %979
    %983 = vset.pattern.permute.xlu0 0
    %984 = vperm.xlu0 %983, %v966
    %v985 = vpop.permute.xlu0 %984
    %v991 = vunpack.c.l.b16 %v958
    %v992 = vunpack.c.l.b16 %v959
    %v993 = vunpack.c.l.b16 %v960
    %v994 = vunpack.c.l.b16 %v961
    %v995 = vpack.c.b16 %v992, %v991
    %v996 = vpack.c.b16 %v994, %v993
    %vm997 = vcmask 64512
    %v999 = vsel %vm997, %v995, 0
    %v1002 = vsel %vm997, %v996, 0
    %vm1004 = vcmask 1043456
    %v1006 = vsel %vm1004, %v962, 0
    %1008 = vmatprep.subr.bf16.mxu0 0
    %1009 = vmatpush1.bf16.msra.mxu0 0
    %1010 = vmatprep.subr.bf16.mxu0 0
    %1011 = vmatpush1.bf16.msra.mxu0 0
    %1012 = vmatprep.subr.bf16.mxu0 0
    %1013 = vmatpush1.bf16.msra.mxu0 0
    %1014 = vmatprep.subr.bf16.mxu0 0
    %1015 = vmatpush1.bf16.msra.mxu0 0
    %1016 = vmatprep.subr.bf16.mxu0 0
    %1017 = vmatpush1.bf16.msra.mxu0 0
    %1018 = vmatprep.subr.bf16.mxu0 0
    %1019 = vmatpush1.bf16.msra.mxu0 0
    %1020 = vmatprep.subr.bf16.mxu0 0
    %1021 = vmatpush1.bf16.msra.mxu0 0
    %1022 = vmatprep.subr.bf16.mxu0 0
    %1023 = vmatpush1.bf16.msra.mxu0 %v1006
    %1024 = vmatprep.subr.bf16.mxu0 0
    %1025 = vmatpush2.bf16.msra.mxu0 0
    %1026 = vmatprep.subr.bf16.mxu0 0
    %1027 = vmatpush2.bf16.msra.mxu0 0
    %1028 = vmatprep.subr.bf16.mxu0 0
    %1029 = vmatpush2.bf16.msra.mxu0 0
    %1030 = vmatprep.subr.bf16.mxu0 0
    %1031 = vmatpush2.bf16.msra.mxu0 0
    %1032 = vmatprep.subr.bf16.mxu0 0
    %1033 = vmatpush2.bf16.msra.mxu0 0
    %1034 = vmatprep.subr.bf16.mxu0 0
    %1035 = vmatpush2.bf16.msra.mxu0 0
    %1036 = vmatprep.subr.bf16.mxu0 0
    %1037 = vmatpush2.bf16.msra.mxu0 0
    %1038 = vmatprep.subr.bf16.mxu0 0
    %1039 = vmatpush2.bf16.msra.mxu0 0
    %1040 = vmatprep.mubr.bf16.mxu0 0
    %1041 = vmatmul.mubr.bf16.gmra.mxu0 %v999
    %v1042 = vpop.f32.mrf.mxu0
    %v1043 = vadd.f32 %v970, %v1042
    %v1044 = vpop.f32.mrf.mxu0
    %v1045 = vpop.f32.mrf.mxu0
    %v1046 = vadd.f32 %v975, %v1045
    %v1047 = vpop.f32.mrf.mxu0
    %1048 = vmatprep.mubr.bf16.mxu0 0
    %1049 = vmatmul.mubr.bf16.gmra.mxu0 %v1002
    %v1050 = vpop.f32.mrf.mxu0
    %v1051 = vadd.f32 %v980, %v1050
    %v1052 = vpop.f32.mrf.mxu0
    %v1053 = vpop.f32.mrf.mxu0
    %v1054 = vadd.f32 %v985, %v1053
    %v1055 = vpop.f32.mrf.mxu0
    %1056 = vdwg.mxu0
    %1057 = vrot.lane.b32.xlu0 %v1043, 1
    %v1058 = vpop.permute.xlu0 %1057
    %1059 = vrot.lane.b32.xlu0 %v1046, 1
    %v1060 = vpop.permute.xlu0 %1059
    %1061 = vrot.lane.b32.xlu0 %v1051, 1
    %v1062 = vpop.permute.xlu0 %1061
    %1063 = vrot.lane.b32.xlu0 %v1054, 1
    %v1064 = vpop.permute.xlu0 %1063
    %v1065 = vsel %vm182, %v1058, 0.0
    %v1066 = vsel %vm182, %v1060, 0.0
    %v1067 = vsel %vm182, %v1062, 0.0
    %v1068 = vsel %vm182, %v1064, 0.0
    %1069 = vrot.lane.b32.xlu0 %v1043, 127
    %v1070 = vpop.permute.xlu0 %1069
    %1071 = vrot.lane.b32.xlu0 %v1046, 127
    %v1072 = vpop.permute.xlu0 %1071
    %1073 = vrot.lane.b32.xlu0 %v1051, 127
    %v1074 = vpop.permute.xlu0 %1073
    %1075 = vrot.lane.b32.xlu0 %v1054, 127
    %v1076 = vpop.permute.xlu0 %1075
    %v1077 = vsel %vm200, %v1070, 0.0
    %v1078 = vsel %vm200, %v1072, 0.0
    %v1079 = vsel %vm200, %v1074, 0.0
    %v1080 = vsel %vm200, %v1076, 0.0
    %v1081 = vld [vmem:[%s12] sm:$0xf]
    %v1082 = vld [vmem:[%s12 + $0x4] sm:$0xf]
    %v1083 = vld [vmem:[%s12 + $0x8] sm:$0xf]
    %v1084 = vld [vmem:[%s12 + $0xc] sm:$0xf]
    %v1085 = vpack.c.bf16 %v1066, %v1065
    %v1086 = vpack.c.bf16 %v1068, %v1067
    %v1087 = vpack.c.bf16 %v1046, %v1043
    %v1088 = vpack.c.bf16 %v1054, %v1051
    %v1089 = vpack.c.bf16 %v1078, %v1077
    %v1090 = vpack.c.bf16 %v1080, %v1079
    %v1091 = vld [vmem:[%s13] sm:$0xff]
    %v1092 = vld [vmem:[%s13 + $0x8] sm:$0xff]
    %v1093 = vld [vmem:[%s13 + $0x10] sm:$0xff]
    %v1094 = vld [vmem:[%s13 + $0x18] sm:$0xff]
    %1096 = vset.pattern.permute.xlu0 0
    %1097 = vperm.xlu0 %1096, %v1091
    %v1098 = vpop.permute.xlu0 %1097
    %1101 = vset.pattern.permute.xlu0 0
    %1102 = vperm.xlu0 %1101, %v1092
    %v1103 = vpop.permute.xlu0 %1102
    %1106 = vset.pattern.permute.xlu0 0
    %1107 = vperm.xlu0 %1106, %v1093
    %v1108 = vpop.permute.xlu0 %1107
    %1111 = vset.pattern.permute.xlu0 0
    %1112 = vperm.xlu0 %1111, %v1094
    %v1113 = vpop.permute.xlu0 %1112
    %v1119 = vunpack.c.l.b16 %v1081
    %v1120 = vunpack.c.l.b16 %v1082
    %v1121 = vunpack.c.l.b16 %v1083
    %v1122 = vunpack.c.l.b16 %v1084
    %v1123 = vpack.c.b16 %v1120, %v1119
    %v1124 = vpack.c.b16 %v1122, %v1121
    %v1126 = vsel %vm249, %v1123, 0
    %v1129 = vsel %vm249, %v1124, 0
    %1131 = vmatprep.subr.bf16.mxu0 0
    %1132 = vmatpush1.bf16.msra.mxu0 0
    %1133 = vmatprep.subr.bf16.mxu0 0
    %1134 = vmatpush1.bf16.msra.mxu0 0
    %1135 = vmatprep.subr.bf16.mxu0 0
    %1136 = vmatpush1.bf16.msra.mxu0 %v1090
    %1137 = vmatprep.subr.bf16.mxu0 0
    %1138 = vmatpush1.bf16.msra.mxu0 %v1089
    %1139 = vmatprep.subr.bf16.mxu0 0
    %1140 = vmatpush1.bf16.msra.mxu0 %v1088
    %1141 = vmatprep.subr.bf16.mxu0 0
    %1142 = vmatpush1.bf16.msra.mxu0 %v1087
    %1143 = vmatprep.subr.bf16.mxu0 0
    %1144 = vmatpush1.bf16.msra.mxu0 %v1086
    %1145 = vmatprep.subr.bf16.mxu0 0
    %1146 = vmatpush1.bf16.msra.mxu0 %v1085
    %1147 = vmatprep.subr.bf16.mxu0 0
    %1148 = vmatpush2.bf16.msra.mxu0 0
    %1149 = vmatprep.subr.bf16.mxu0 0
    %1150 = vmatpush2.bf16.msra.mxu0 0
    %1151 = vmatprep.subr.bf16.mxu0 0
    %1152 = vmatpush2.bf16.msra.mxu0 0
    %1153 = vmatprep.subr.bf16.mxu0 0
    %1154 = vmatpush2.bf16.msra.mxu0 0
    %1155 = vmatprep.subr.bf16.mxu0 0
    %1156 = vmatpush2.bf16.msra.mxu0 0
    %1157 = vmatprep.subr.bf16.mxu0 0
    %1158 = vmatpush2.bf16.msra.mxu0 0
    %1159 = vmatprep.subr.bf16.mxu0 0
    %1160 = vmatpush2.bf16.msra.mxu0 0
    %1161 = vmatprep.subr.bf16.mxu0 0
    %1162 = vmatpush2.bf16.msra.mxu0 0
    %1163 = vmatprep.mubr.bf16.mxu0 0
    %1164 = vmatmul.mubr.bf16.gmra.mxu0 %v1126
    %v1165 = vpop.f32.mrf.mxu0
    %v1166 = vadd.f32 %v1098, %v1165
    %v1167 = vpop.f32.mrf.mxu0
    %v1168 = vpop.f32.mrf.mxu0
    %v1169 = vadd.f32 %v1103, %v1168
    %v1170 = vpop.f32.mrf.mxu0
    %1171 = vmatprep.mubr.bf16.mxu0 0
    %1172 = vmatmul.mubr.bf16.gmra.mxu0 %v1129
    %v1173 = vpop.f32.mrf.mxu0
    %v1174 = vadd.f32 %v1108, %v1173
    %v1175 = vpop.f32.mrf.mxu0
    %v1176 = vpop.f32.mrf.mxu0
    %v1177 = vadd.f32 %v1113, %v1176
    %v1178 = vpop.f32.mrf.mxu0
    %1179 = vdwg.mxu0
    %v1180 = vmax.f32 %v1166, 0.0
    %v1181 = vmax.f32 %v1169, 0.0
    %v1182 = vmax.f32 %v1174, 0.0
    %v1183 = vmax.f32 %v1177, 0.0
    %v1184 = vld [vmem:[%s14] sm:$0xf]
    %v1185 = vld [vmem:[%s14 + $0x4] sm:$0xf]
    %v1186 = vld [vmem:[%s14 + $0x8] sm:$0xf]
    %v1187 = vld [vmem:[%s14 + $0xc] sm:$0xf]
    %v1188 = vpack.c.bf16 %v1181, %v1180
    %v1189 = vpack.c.bf16 %v1183, %v1182
    %v1194 = vunpack.c.l.b16 %v1184
    %v1195 = vunpack.c.l.b16 %v1185
    %v1196 = vunpack.c.l.b16 %v1186
    %v1197 = vunpack.c.l.b16 %v1187
    %v1198 = vpack.c.b16 %v1195, %v1194
    %v1199 = vpack.c.b16 %v1197, %v1196
    %v1201 = vsel %vm325, %v1198, 0
    %v1204 = vsel %vm325, %v1199, 0
    %1206 = vmatprep.subr.bf16.mxu0 0
    %1207 = vmatpush1.bf16.msra.mxu0 0
    %1208 = vmatprep.subr.bf16.mxu0 0
    %1209 = vmatpush1.bf16.msra.mxu0 0
    %1210 = vmatprep.subr.bf16.mxu0 0
    %1211 = vmatpush1.bf16.msra.mxu0 0
    %1212 = vmatprep.subr.bf16.mxu0 0
    %1213 = vmatpush1.bf16.msra.mxu0 0
    %1214 = vmatprep.subr.bf16.mxu0 0
    %1215 = vmatpush1.bf16.msra.mxu0 0
    %1216 = vmatprep.subr.bf16.mxu0 0
    %1217 = vmatpush1.bf16.msra.mxu0 0
    %1218 = vmatprep.subr.bf16.mxu0 0
    %1219 = vmatpush1.bf16.msra.mxu0 %v1189
    %1220 = vmatprep.subr.bf16.mxu0 0
    %1221 = vmatpush1.bf16.msra.mxu0 %v1188
    %1222 = vmatprep.subr.bf16.mxu0 0
    %1223 = vmatpush2.bf16.msra.mxu0 0
    %1224 = vmatprep.subr.bf16.mxu0 0
    %1225 = vmatpush2.bf16.msra.mxu0 0
    %1226 = vmatprep.subr.bf16.mxu0 0
    %1227 = vmatpush2.bf16.msra.mxu0 0
    %1228 = vmatprep.subr.bf16.mxu0 0
    %1229 = vmatpush2.bf16.msra.mxu0 0
    %1230 = vmatprep.subr.bf16.mxu0 0
    %1231 = vmatpush2.bf16.msra.mxu0 0
    %1232 = vmatprep.subr.bf16.mxu0 0
    %1233 = vmatpush2.bf16.msra.mxu0 0
    %1234 = vmatprep.subr.bf16.mxu0 0
    %1235 = vmatpush2.bf16.msra.mxu0 0
    %1236 = vmatprep.subr.bf16.mxu0 0
    %1237 = vmatpush2.bf16.msra.mxu0 0
    %1238 = vmatprep.mubr.bf16.mxu0 0
    %1239 = vmatmul.mubr.bf16.gmra.mxu0 %v1201
    %v1240 = vpop.f32.mrf.mxu0
    %v1241 = vadd.f32 0.0, %v1240
    %v1242 = vpop.f32.mrf.mxu0
    %v1243 = vpop.f32.mrf.mxu0
    %v1244 = vadd.f32 0.0, %v1243
    %v1245 = vpop.f32.mrf.mxu0
    %1246 = vmatprep.mubr.bf16.mxu0 0
    %1247 = vmatmul.mubr.bf16.gmra.mxu0 %v1204
    %v1248 = vpop.f32.mrf.mxu0
    %v1249 = vadd.f32 0.0, %v1248
    %v1250 = vpop.f32.mrf.mxu0
    %v1251 = vpop.f32.mrf.mxu0
    %v1252 = vadd.f32 0.0, %v1251
    %v1253 = vpop.f32.mrf.mxu0
    %1254 = vdwg.mxu0
    %v1255 = vadd.f32 %v1043, %v1241
    %v1256 = vadd.f32 %v1046, %v1244
    %v1257 = vadd.f32 %v1051, %v1249
    %v1258 = vadd.f32 %v1054, %v1252
    %v1259 = vld [vmem:[%s15] sm:$0xff]
    %v1260 = vld [vmem:[%s15 + $0x8] sm:$0xff]
    %v1261 = vld [vmem:[%s15 + $0x10] sm:$0xff]
    %v1262 = vld [vmem:[%s15 + $0x18] sm:$0xff]
    %1264 = vset.pattern.permute.xlu0 0
    %1265 = vperm.xlu0 %1264, %v1259
    %v1266 = vpop.permute.xlu0 %1265
    %1269 = vset.pattern.permute.xlu0 0
    %1270 = vperm.xlu0 %1269, %v1260
    %v1271 = vpop.permute.xlu0 %1270
    %1274 = vset.pattern.permute.xlu0 0
    %1275 = vperm.xlu0 %1274, %v1261
    %v1276 = vpop.permute.xlu0 %1275
    %1279 = vset.pattern.permute.xlu0 0
    %1280 = vperm.xlu0 %1279, %v1262
    %v1281 = vpop.permute.xlu0 %1280
    %v1283 = vadd.f32 %v1255, %v1266
    %v1284 = vadd.f32 %v1256, %v1271
    %v1285 = vadd.f32 %v1257, %v1276
    %v1286 = vadd.f32 %v1258, %v1281
    %1287 = vrot.lane.b32.xlu0 %v1283, 2
    %v1288 = vpop.permute.xlu0 %1287
    %1289 = vrot.lane.b32.xlu0 %v1284, 2
    %v1290 = vpop.permute.xlu0 %1289
    %1291 = vrot.lane.b32.xlu0 %v1285, 2
    %v1292 = vpop.permute.xlu0 %1291
    %1293 = vrot.lane.b32.xlu0 %v1286, 2
    %v1294 = vpop.permute.xlu0 %1293
    %v1295 = vsel %vm426, %v1288, 0.0
    %v1296 = vsel %vm426, %v1290, 0.0
    %v1297 = vsel %vm426, %v1292, 0.0
    %v1298 = vsel %vm426, %v1294, 0.0
    %1299 = vrot.lane.b32.xlu0 %v1283, 126
    %v1300 = vpop.permute.xlu0 %1299
    %1301 = vrot.lane.b32.xlu0 %v1284, 126
    %v1302 = vpop.permute.xlu0 %1301
    %1303 = vrot.lane.b32.xlu0 %v1285, 126
    %v1304 = vpop.permute.xlu0 %1303
    %1305 = vrot.lane.b32.xlu0 %v1286, 126
    %v1306 = vpop.permute.xlu0 %1305
    %v1307 = vsel %vm444, %v1300, 0.0
    %v1308 = vsel %vm444, %v1302, 0.0
    %v1309 = vsel %vm444, %v1304, 0.0
    %v1310 = vsel %vm444, %v1306, 0.0
    %s1311 = scalar_lea.vmem %s12, 16
    %v1312 = vld [vmem:[%s1311] sm:$0xf]
    %v1313 = vld [vmem:[%s1311 + $0x4] sm:$0xf]
    %v1314 = vld [vmem:[%s1311 + $0x8] sm:$0xf]
    %v1315 = vld [vmem:[%s1311 + $0xc] sm:$0xf]
    %v1316 = vpack.c.bf16 %v1296, %v1295
    %v1317 = vpack.c.bf16 %v1298, %v1297
    %v1318 = vpack.c.bf16 %v1284, %v1283
    %v1319 = vpack.c.bf16 %v1286, %v1285
    %v1320 = vpack.c.bf16 %v1308, %v1307
    %v1321 = vpack.c.bf16 %v1310, %v1309
    %s1322 = scalar_lea.vmem %s13, 32
    %v1323 = vld [vmem:[%s1322] sm:$0xff]
    %v1324 = vld [vmem:[%s1322 + $0x8] sm:$0xff]
    %v1325 = vld [vmem:[%s1322 + $0x10] sm:$0xff]
    %v1326 = vld [vmem:[%s1322 + $0x18] sm:$0xff]
    %1328 = vset.pattern.permute.xlu0 0
    %1329 = vperm.xlu0 %1328, %v1323
    %v1330 = vpop.permute.xlu0 %1329
    %1333 = vset.pattern.permute.xlu0 0
    %1334 = vperm.xlu0 %1333, %v1324
    %v1335 = vpop.permute.xlu0 %1334
    %1338 = vset.pattern.permute.xlu0 0
    %1339 = vperm.xlu0 %1338, %v1325
    %v1340 = vpop.permute.xlu0 %1339
    %1343 = vset.pattern.permute.xlu0 0
    %1344 = vperm.xlu0 %1343, %v1326
    %v1345 = vpop.permute.xlu0 %1344
    %v1351 = vunpack.c.l.b16 %v1312
    %v1352 = vunpack.c.l.b16 %v1313
    %v1353 = vunpack.c.l.b16 %v1314
    %v1354 = vunpack.c.l.b16 %v1315
    %v1355 = vpack.c.b16 %v1352, %v1351
    %v1356 = vpack.c.b16 %v1354, %v1353
    %v1358 = vsel %vm249, %v1355, 0
    %v1361 = vsel %vm249, %v1356, 0
    %1363 = vmatprep.subr.bf16.mxu0 0
    %1364 = vmatpush1.bf16.msra.mxu0 0
    %1365 = vmatprep.subr.bf16.mxu0 0
    %1366 = vmatpush1.bf16.msra.mxu0 0
    %1367 = vmatprep.subr.bf16.mxu0 0
    %1368 = vmatpush1.bf16.msra.mxu0 %v1321
    %1369 = vmatprep.subr.bf16.mxu0 0
    %1370 = vmatpush1.bf16.msra.mxu0 %v1320
    %1371 = vmatprep.subr.bf16.mxu0 0
    %1372 = vmatpush1.bf16.msra.mxu0 %v1319
    %1373 = vmatprep.subr.bf16.mxu0 0
    %1374 = vmatpush1.bf16.msra.mxu0 %v1318
    %1375 = vmatprep.subr.bf16.mxu0 0
    %1376 = vmatpush1.bf16.msra.mxu0 %v1317
    %1377 = vmatprep.subr.bf16.mxu0 0
    %1378 = vmatpush1.bf16.msra.mxu0 %v1316
    %1379 = vmatprep.subr.bf16.mxu0 0
    %1380 = vmatpush2.bf16.msra.mxu0 0
    %1381 = vmatprep.subr.bf16.mxu0 0
    %1382 = vmatpush2.bf16.msra.mxu0 0
    %1383 = vmatprep.subr.bf16.mxu0 0
    %1384 = vmatpush2.bf16.msra.mxu0 0
    %1385 = vmatprep.subr.bf16.mxu0 0
    %1386 = vmatpush2.bf16.msra.mxu0 0
    %1387 = vmatprep.subr.bf16.mxu0 0
    %1388 = vmatpush2.bf16.msra.mxu0 0
    %1389 = vmatprep.subr.bf16.mxu0 0
    %1390 = vmatpush2.bf16.msra.mxu0 0
    %1391 = vmatprep.subr.bf16.mxu0 0
    %1392 = vmatpush2.bf16.msra.mxu0 0
    %1393 = vmatprep.subr.bf16.mxu0 0
    %1394 = vmatpush2.bf16.msra.mxu0 0
    %1395 = vmatprep.mubr.bf16.mxu0 0
    %1396 = vmatmul.mubr.bf16.gmra.mxu0 %v1358
    %v1397 = vpop.f32.mrf.mxu0
    %v1398 = vadd.f32 %v1330, %v1397
    %v1399 = vpop.f32.mrf.mxu0
    %v1400 = vpop.f32.mrf.mxu0
    %v1401 = vadd.f32 %v1335, %v1400
    %v1402 = vpop.f32.mrf.mxu0
    %1403 = vmatprep.mubr.bf16.mxu0 0
    %1404 = vmatmul.mubr.bf16.gmra.mxu0 %v1361
    %v1405 = vpop.f32.mrf.mxu0
    %v1406 = vadd.f32 %v1340, %v1405
    %v1407 = vpop.f32.mrf.mxu0
    %v1408 = vpop.f32.mrf.mxu0
    %v1409 = vadd.f32 %v1345, %v1408
    %v1410 = vpop.f32.mrf.mxu0
    %1411 = vdwg.mxu0
    %v1412 = vmax.f32 %v1398, 0.0
    %v1413 = vmax.f32 %v1401, 0.0
    %v1414 = vmax.f32 %v1406, 0.0
    %v1415 = vmax.f32 %v1409, 0.0
    %s1416 = scalar_lea.vmem %s14, 16
    %v1417 = vld [vmem:[%s1416] sm:$0xf]
    %v1418 = vld [vmem:[%s1416 + $0x4] sm:$0xf]
    %v1419 = vld [vmem:[%s1416 + $0x8] sm:$0xf]
    %v1420 = vld [vmem:[%s1416 + $0xc] sm:$0xf]
    %v1421 = vpack.c.bf16 %v1413, %v1412
    %v1422 = vpack.c.bf16 %v1415, %v1414
    %v1427 = vunpack.c.l.b16 %v1417
    %v1428 = vunpack.c.l.b16 %v1418
    %v1429 = vunpack.c.l.b16 %v1419
    %v1430 = vunpack.c.l.b16 %v1420
    %v1431 = vpack.c.b16 %v1428, %v1427
    %v1432 = vpack.c.b16 %v1430, %v1429
    %v1434 = vsel %vm325, %v1431, 0
    %v1437 = vsel %vm325, %v1432, 0
    %1439 = vmatprep.subr.bf16.mxu0 0
    %1440 = vmatpush1.bf16.msra.mxu0 0
    %1441 = vmatprep.subr.bf16.mxu0 0
    %1442 = vmatpush1.bf16.msra.mxu0 0
    %1443 = vmatprep.subr.bf16.mxu0 0
    %1444 = vmatpush1.bf16.msra.mxu0 0
    %1445 = vmatprep.subr.bf16.mxu0 0
    %1446 = vmatpush1.bf16.msra.mxu0 0
    %1447 = vmatprep.subr.bf16.mxu0 0
    %1448 = vmatpush1.bf16.msra.mxu0 0
    %1449 = vmatprep.subr.bf16.mxu0 0
    %1450 = vmatpush1.bf16.msra.mxu0 0
    %1451 = vmatprep.subr.bf16.mxu0 0
    %1452 = vmatpush1.bf16.msra.mxu0 %v1422
    %1453 = vmatprep.subr.bf16.mxu0 0
    %1454 = vmatpush1.bf16.msra.mxu0 %v1421
    %1455 = vmatprep.subr.bf16.mxu0 0
    %1456 = vmatpush2.bf16.msra.mxu0 0
    %1457 = vmatprep.subr.bf16.mxu0 0
    %1458 = vmatpush2.bf16.msra.mxu0 0
    %1459 = vmatprep.subr.bf16.mxu0 0
    %1460 = vmatpush2.bf16.msra.mxu0 0
    %1461 = vmatprep.subr.bf16.mxu0 0
    %1462 = vmatpush2.bf16.msra.mxu0 0
    %1463 = vmatprep.subr.bf16.mxu0 0
    %1464 = vmatpush2.bf16.msra.mxu0 0
    %1465 = vmatprep.subr.bf16.mxu0 0
    %1466 = vmatpush2.bf16.msra.mxu0 0
    %1467 = vmatprep.subr.bf16.mxu0 0
    %1468 = vmatpush2.bf16.msra.mxu0 0
    %1469 = vmatprep.subr.bf16.mxu0 0
    %1470 = vmatpush2.bf16.msra.mxu0 0
    %1471 = vmatprep.mubr.bf16.mxu0 0
    %1472 = vmatmul.mubr.bf16.gmra.mxu0 %v1434
    %v1473 = vpop.f32.mrf.mxu0
    %v1474 = vadd.f32 0.0, %v1473
    %v1475 = vpop.f32.mrf.mxu0
    %v1476 = vpop.f32.mrf.mxu0
    %v1477 = vadd.f32 0.0, %v1476
    %v1478 = vpop.f32.mrf.mxu0
    %1479 = vmatprep.mubr.bf16.mxu0 0
    %1480 = vmatmul.mubr.bf16.gmra.mxu0 %v1437
    %v1481 = vpop.f32.mrf.mxu0
    %v1482 = vadd.f32 0.0, %v1481
    %v1483 = vpop.f32.mrf.mxu0
    %v1484 = vpop.f32.mrf.mxu0
    %v1485 = vadd.f32 0.0, %v1484
    %v1486 = vpop.f32.mrf.mxu0
    %1487 = vdwg.mxu0
    %v1488 = vadd.f32 %v1283, %v1474
    %v1489 = vadd.f32 %v1284, %v1477
    %v1490 = vadd.f32 %v1285, %v1482
    %v1491 = vadd.f32 %v1286, %v1485
    %s1492 = scalar_lea.vmem %s15, 32
    %v1493 = vld [vmem:[%s1492] sm:$0xff]
    %v1494 = vld [vmem:[%s1492 + $0x8] sm:$0xff]
    %v1495 = vld [vmem:[%s1492 + $0x10] sm:$0xff]
    %v1496 = vld [vmem:[%s1492 + $0x18] sm:$0xff]
    %1498 = vset.pattern.permute.xlu0 0
    %1499 = vperm.xlu0 %1498, %v1493
    %v1500 = vpop.permute.xlu0 %1499
    %1503 = vset.pattern.permute.xlu0 0
    %1504 = vperm.xlu0 %1503, %v1494
    %v1505 = vpop.permute.xlu0 %1504
    %1508 = vset.pattern.permute.xlu0 0
    %1509 = vperm.xlu0 %1508, %v1495
    %v1510 = vpop.permute.xlu0 %1509
    %1513 = vset.pattern.permute.xlu0 0
    %1514 = vperm.xlu0 %1513, %v1496
    %v1515 = vpop.permute.xlu0 %1514
    %v1517 = vadd.f32 %v1488, %v1500
    %v1518 = vadd.f32 %v1489, %v1505
    %v1519 = vadd.f32 %v1490, %v1510
    %v1520 = vadd.f32 %v1491, %v1515
    %1521 = vrot.lane.b32.xlu0 %v1517, 4
    %v1522 = vpop.permute.xlu0 %1521
    %1523 = vrot.lane.b32.xlu0 %v1518, 4
    %v1524 = vpop.permute.xlu0 %1523
    %1525 = vrot.lane.b32.xlu0 %v1519, 4
    %v1526 = vpop.permute.xlu0 %1525
    %1527 = vrot.lane.b32.xlu0 %v1520, 4
    %v1528 = vpop.permute.xlu0 %1527
    %v1529 = vsel %vm672, %v1522, 0.0
    %v1530 = vsel %vm672, %v1524, 0.0
    %v1531 = vsel %vm672, %v1526, 0.0
    %v1532 = vsel %vm672, %v1528, 0.0
    %1533 = vrot.lane.b32.xlu0 %v1517, 124
    %v1534 = vpop.permute.xlu0 %1533
    %1535 = vrot.lane.b32.xlu0 %v1518, 124
    %v1536 = vpop.permute.xlu0 %1535
    %1537 = vrot.lane.b32.xlu0 %v1519, 124
    %v1538 = vpop.permute.xlu0 %1537
    %1539 = vrot.lane.b32.xlu0 %v1520, 124
    %v1540 = vpop.permute.xlu0 %1539
    %v1541 = vsel %vm690, %v1534, 0.0
    %v1542 = vsel %vm690, %v1536, 0.0
    %v1543 = vsel %vm690, %v1538, 0.0
    %v1544 = vsel %vm690, %v1540, 0.0
    %s1545 = scalar_lea.vmem %s12, 32
    %v1546 = vld [vmem:[%s1545] sm:$0xf]
    %v1547 = vld [vmem:[%s1545 + $0x4] sm:$0xf]
    %v1548 = vld [vmem:[%s1545 + $0x8] sm:$0xf]
    %v1549 = vld [vmem:[%s1545 + $0xc] sm:$0xf]
    %v1550 = vpack.c.bf16 %v1530, %v1529
    %v1551 = vpack.c.bf16 %v1532, %v1531
    %v1552 = vpack.c.bf16 %v1518, %v1517
    %v1553 = vpack.c.bf16 %v1520, %v1519
    %v1554 = vpack.c.bf16 %v1542, %v1541
    %v1555 = vpack.c.bf16 %v1544, %v1543
    %s1556 = scalar_lea.vmem %s13, 64
    %v1557 = vld [vmem:[%s1556] sm:$0xff]
    %v1558 = vld [vmem:[%s1556 + $0x8] sm:$0xff]
    %v1559 = vld [vmem:[%s1556 + $0x10] sm:$0xff]
    %v1560 = vld [vmem:[%s1556 + $0x18] sm:$0xff]
    %1562 = vset.pattern.permute.xlu0 0
    %1563 = vperm.xlu0 %1562, %v1557
    %v1564 = vpop.permute.xlu0 %1563
    %1567 = vset.pattern.permute.xlu0 0
    %1568 = vperm.xlu0 %1567, %v1558
    %v1569 = vpop.permute.xlu0 %1568
    %1572 = vset.pattern.permute.xlu0 0
    %1573 = vperm.xlu0 %1572, %v1559
    %v1574 = vpop.permute.xlu0 %1573
    %1577 = vset.pattern.permute.xlu0 0
    %1578 = vperm.xlu0 %1577, %v1560
    %v1579 = vpop.permute.xlu0 %1578
    %v1585 = vunpack.c.l.b16 %v1546
    %v1586 = vunpack.c.l.b16 %v1547
    %v1587 = vunpack.c.l.b16 %v1548
    %v1588 = vunpack.c.l.b16 %v1549
    %v1589 = vpack.c.b16 %v1586, %v1585
    %v1590 = vpack.c.b16 %v1588, %v1587
    %v1592 = vsel %vm249, %v1589, 0
    %v1595 = vsel %vm249, %v1590, 0
    %1597 = vmatprep.subr.bf16.mxu0 0
    %1598 = vmatpush1.bf16.msra.mxu0 0
    %1599 = vmatprep.subr.bf16.mxu0 0
    %1600 = vmatpush1.bf16.msra.mxu0 0
    %1601 = vmatprep.subr.bf16.mxu0 0
    %1602 = vmatpush1.bf16.msra.mxu0 %v1555
    %1603 = vmatprep.subr.bf16.mxu0 0
    %1604 = vmatpush1.bf16.msra.mxu0 %v1554
    %1605 = vmatprep.subr.bf16.mxu0 0
    %1606 = vmatpush1.bf16.msra.mxu0 %v1553
    %1607 = vmatprep.subr.bf16.mxu0 0
    %1608 = vmatpush1.bf16.msra.mxu0 %v1552
    %1609 = vmatprep.subr.bf16.mxu0 0
    %1610 = vmatpush1.bf16.msra.mxu0 %v1551
    %1611 = vmatprep.subr.bf16.mxu0 0
    %1612 = vmatpush1.bf16.msra.mxu0 %v1550
    %1613 = vmatprep.subr.bf16.mxu0 0
    %1614 = vmatpush2.bf16.msra.mxu0 0
    %1615 = vmatprep.subr.bf16.mxu0 0
    %1616 = vmatpush2.bf16.msra.mxu0 0
    %1617 = vmatprep.subr.bf16.mxu0 0
    %1618 = vmatpush2.bf16.msra.mxu0 0
    %1619 = vmatprep.subr.bf16.mxu0 0
    %1620 = vmatpush2.bf16.msra.mxu0 0
    %1621 = vmatprep.subr.bf16.mxu0 0
    %1622 = vmatpush2.bf16.msra.mxu0 0
    %1623 = vmatprep.subr.bf16.mxu0 0
    %1624 = vmatpush2.bf16.msra.mxu0 0
    %1625 = vmatprep.subr.bf16.mxu0 0
    %1626 = vmatpush2.bf16.msra.mxu0 0
    %1627 = vmatprep.subr.bf16.mxu0 0
    %1628 = vmatpush2.bf16.msra.mxu0 0
    %1629 = vmatprep.mubr.bf16.mxu0 0
    %1630 = vmatmul.mubr.bf16.gmra.mxu0 %v1592
    %v1631 = vpop.f32.mrf.mxu0
    %v1632 = vadd.f32 %v1564, %v1631
    %v1633 = vpop.f32.mrf.mxu0
    %v1634 = vpop.f32.mrf.mxu0
    %v1635 = vadd.f32 %v1569, %v1634
    %v1636 = vpop.f32.mrf.mxu0
    %1637 = vmatprep.mubr.bf16.mxu0 0
    %1638 = vmatmul.mubr.bf16.gmra.mxu0 %v1595
    %v1639 = vpop.f32.mrf.mxu0
    %v1640 = vadd.f32 %v1574, %v1639
    %v1641 = vpop.f32.mrf.mxu0
    %v1642 = vpop.f32.mrf.mxu0
    %v1643 = vadd.f32 %v1579, %v1642
    %v1644 = vpop.f32.mrf.mxu0
    %1645 = vdwg.mxu0
    %v1646 = vmax.f32 %v1632, 0.0
    %v1647 = vmax.f32 %v1635, 0.0
    %v1648 = vmax.f32 %v1640, 0.0
    %v1649 = vmax.f32 %v1643, 0.0
    %s1650 = scalar_lea.vmem %s14, 32
    %v1651 = vld [vmem:[%s1650] sm:$0xf]
    %v1652 = vld [vmem:[%s1650 + $0x4] sm:$0xf]
    %v1653 = vld [vmem:[%s1650 + $0x8] sm:$0xf]
    %v1654 = vld [vmem:[%s1650 + $0xc] sm:$0xf]
    %v1655 = vpack.c.bf16 %v1647, %v1646
    %v1656 = vpack.c.bf16 %v1649, %v1648
    %v1661 = vunpack.c.l.b16 %v1651
    %v1662 = vunpack.c.l.b16 %v1652
    %v1663 = vunpack.c.l.b16 %v1653
    %v1664 = vunpack.c.l.b16 %v1654
    %v1665 = vpack.c.b16 %v1662, %v1661
    %v1666 = vpack.c.b16 %v1664, %v1663
    %v1668 = vsel %vm325, %v1665, 0
    %v1671 = vsel %vm325, %v1666, 0
    %1673 = vmatprep.subr.bf16.mxu0 0
    %1674 = vmatpush1.bf16.msra.mxu0 0
    %1675 = vmatprep.subr.bf16.mxu0 0
    %1676 = vmatpush1.bf16.msra.mxu0 0
    %1677 = vmatprep.subr.bf16.mxu0 0
    %1678 = vmatpush1.bf16.msra.mxu0 0
    %1679 = vmatprep.subr.bf16.mxu0 0
    %1680 = vmatpush1.bf16.msra.mxu0 0
    %1681 = vmatprep.subr.bf16.mxu0 0
    %1682 = vmatpush1.bf16.msra.mxu0 0
    %1683 = vmatprep.subr.bf16.mxu0 0
    %1684 = vmatpush1.bf16.msra.mxu0 0
    %1685 = vmatprep.subr.bf16.mxu0 0
    %1686 = vmatpush1.bf16.msra.mxu0 %v1656
    %1687 = vmatprep.subr.bf16.mxu0 0
    %1688 = vmatpush1.bf16.msra.mxu0 %v1655
    %1689 = vmatprep.subr.bf16.mxu0 0
    %1690 = vmatpush2.bf16.msra.mxu0 0
    %1691 = vmatprep.subr.bf16.mxu0 0
    %1692 = vmatpush2.bf16.msra.mxu0 0
    %1693 = vmatprep.subr.bf16.mxu0 0
    %1694 = vmatpush2.bf16.msra.mxu0 0
    %1695 = vmatprep.subr.bf16.mxu0 0
    %1696 = vmatpush2.bf16.msra.mxu0 0
    %1697 = vmatprep.subr.bf16.mxu0 0
    %1698 = vmatpush2.bf16.msra.mxu0 0
    %1699 = vmatprep.subr.bf16.mxu0 0
    %1700 = vmatpush2.bf16.msra.mxu0 0
    %1701 = vmatprep.subr.bf16.mxu0 0
    %1702 = vmatpush2.bf16.msra.mxu0 0
    %1703 = vmatprep.subr.bf16.mxu0 0
    %1704 = vmatpush2.bf16.msra.mxu0 0
    %1705 = vmatprep.mubr.bf16.mxu0 0
    %1706 = vmatmul.mubr.bf16.gmra.mxu0 %v1668
    %v1707 = vpop.f32.mrf.mxu0
    %v1708 = vadd.f32 0.0, %v1707
    %v1709 = vpop.f32.mrf.mxu0
    %v1710 = vpop.f32.mrf.mxu0
    %v1711 = vadd.f32 0.0, %v1710
    %v1712 = vpop.f32.mrf.mxu0
    %1713 = vmatprep.mubr.bf16.mxu0 0
    %1714 = vmatmul.mubr.bf16.gmra.mxu0 %v1671
    %v1715 = vpop.f32.mrf.mxu0
    %v1716 = vadd.f32 0.0, %v1715
    %v1717 = vpop.f32.mrf.mxu0
    %v1718 = vpop.f32.mrf.mxu0
    %v1719 = vadd.f32 0.0, %v1718
    %v1720 = vpop.f32.mrf.mxu0
    %1721 = vdwg.mxu0
    %v1722 = vadd.f32 %v1517, %v1708
    %v1723 = vadd.f32 %v1518, %v1711
    %v1724 = vadd.f32 %v1519, %v1716
    %v1725 = vadd.f32 %v1520, %v1719
    %s1726 = scalar_lea.vmem %s15, 64
    %v1727 = vld [vmem:[%s1726] sm:$0xff]
    %v1728 = vld [vmem:[%s1726 + $0x8] sm:$0xff]
    %v1729 = vld [vmem:[%s1726 + $0x10] sm:$0xff]
    %v1730 = vld [vmem:[%s1726 + $0x18] sm:$0xff]
    %1732 = vset.pattern.permute.xlu0 0
    %1733 = vperm.xlu0 %1732, %v1727
    %v1734 = vpop.permute.xlu0 %1733
    %1737 = vset.pattern.permute.xlu0 0
    %1738 = vperm.xlu0 %1737, %v1728
    %v1739 = vpop.permute.xlu0 %1738
    %1742 = vset.pattern.permute.xlu0 0
    %1743 = vperm.xlu0 %1742, %v1729
    %v1744 = vpop.permute.xlu0 %1743
    %1747 = vset.pattern.permute.xlu0 0
    %1748 = vperm.xlu0 %1747, %v1730
    %v1749 = vpop.permute.xlu0 %1748
    %v1751 = vadd.f32 %v1722, %v1734
    %v1752 = vadd.f32 %v1723, %v1739
    %v1753 = vadd.f32 %v1724, %v1744
    %v1754 = vadd.f32 %v1725, %v1749
    %v1755 = vld [vmem:[%s16] sm:$0xf]
    %v1756 = vpack.c.bf16 %v1752, %v1751
    %v1757 = vpack.c.bf16 %v1754, %v1753
    %v1758 = vld [vmem:[%s17] sm:$0xff]
    %1760 = vset.pattern.permute.xlu0 0
    %1761 = vperm.xlu0 %1760, %v1758
    %v1762 = vpop.permute.xlu0 %1761
    %v1765 = vsel %vm325, %v1755, 0
    %1767 = vmatprep.subr.bf16.mxu0 0
    %1768 = vmatpush1.bf16.msra.mxu0 0
    %1769 = vmatprep.subr.bf16.mxu0 0
    %1770 = vmatpush1.bf16.msra.mxu0 0
    %1771 = vmatprep.subr.bf16.mxu0 0
    %1772 = vmatpush1.bf16.msra.mxu0 0
    %1773 = vmatprep.subr.bf16.mxu0 0
    %1774 = vmatpush1.bf16.msra.mxu0 0
    %1775 = vmatprep.subr.bf16.mxu0 0
    %1776 = vmatpush1.bf16.msra.mxu0 0
    %1777 = vmatprep.subr.bf16.mxu0 0
    %1778 = vmatpush1.bf16.msra.mxu0 0
    %1779 = vmatprep.subr.bf16.mxu0 0
    %1780 = vmatpush1.bf16.msra.mxu0 %v1757
    %1781 = vmatprep.subr.bf16.mxu0 0
    %1782 = vmatpush1.bf16.msra.mxu0 %v1756
    %1783 = vmatprep.subr.bf16.mxu0 0
    %1784 = vmatpush2.bf16.msra.mxu0 0
    %1785 = vmatprep.subr.bf16.mxu0 0
    %1786 = vmatpush2.bf16.msra.mxu0 0
    %1787 = vmatprep.subr.bf16.mxu0 0
    %1788 = vmatpush2.bf16.msra.mxu0 0
    %1789 = vmatprep.subr.bf16.mxu0 0
    %1790 = vmatpush2.bf16.msra.mxu0 0
    %1791 = vmatprep.subr.bf16.mxu0 0
    %1792 = vmatpush2.bf16.msra.mxu0 0
    %1793 = vmatprep.subr.bf16.mxu0 0
    %1794 = vmatpush2.bf16.msra.mxu0 0
    %1795 = vmatprep.subr.bf16.mxu0 0
    %1796 = vmatpush2.bf16.msra.mxu0 0
    %1797 = vmatprep.subr.bf16.mxu0 0
    %1798 = vmatpush2.bf16.msra.mxu0 0
    %1799 = vmatprep.mubr.bf16.mxu0 0
    %1800 = vmatmul.mubr.bf16.gmra.mxu0 %v1765
    %v1801 = vpop.f32.mrf.mxu0
    %v1802 = vadd.f32 %v1762, %v1801
    %v1803 = vpop.f32.mrf.mxu0
    %v1804 = vpop.f32.mrf.mxu0
    %v1805 = vpop.f32.mrf.mxu0
    %1806 = vdwg.mxu0
    %s1807 = scalar_lea.vmem [#allocation2], 8
    %1808 = vst [vmem:[%s1807] sm:$0xff] %v1802
    // Predicated region
    $region74: #{tpu_custom_call.1} parent=1 // pred_check
      _
    $region75: #{tpu_custom_call.1} parent=1 // pred_check_branch
      %1810 = sbr.rel (0) target = $region77
    $region76: #{tpu_custom_call.1} parent=1 // pred_region
      %s1812 = ssub.s32 256, 256
      %1813 = vsyncadd [#allocation3], %s1812
      %s1814 = sshll.u32 [#allocation2], 4
      %s1815 = int_to_ptr.vmem [resolvable:$true] %s1814
      %1820 = dma.vmem_to_hbm [thread:$0]  %s1815, 256, %s18, [#allocation3], 128, 128, 8
    $region77: #{tpu_custom_call.1} parent=1 // pred_fallthru
      _
    // Predicated region
    $region78: #{tpu_custom_call.1} parent=1 // pred_check
      _
    $region79: #{tpu_custom_call.1} parent=1 // pred_check_branch
      %1822 = sbr.rel (0) target = $region81
    $region80: #{tpu_custom_call.1} parent=1 // pred_region
      %1823 = dma.done [#allocation3], 256
    $region81: #{tpu_custom_call.1} parent=1 // pred_fallthru
      _
    %1824 = vsyncpa [#allocation3], 1

</llo_original>
